<compile_context>
chip_gen: v7x
topology: tpu7x:2x2x1
jax: 0.10.0
libtpu: 0.0.40
codegen_flags: <defaults>
</compile_context>

<pallas_src>
import functools
import math

import jax
import jax.numpy as jnp
from jax.experimental import pallas as pl
from jax.experimental.pallas import tpu as pltpu


def _layer_norm(h, gamma, beta, eps=1e-5):
    mu = jnp.mean(h, axis=-1, keepdims=True)
    var = jnp.mean((h - mu) ** 2, axis=-1, keepdims=True)
    return (h - mu) * jax.lax.rsqrt(var + eps) * gamma + beta


def basic_reasoning_kernel(num_heads, bblk, S,
                           # inputs
                           x_ref,
                           w1_ref, b1_ref, g1_ref, be1_ref,
                           w2_ref, b2_ref,
                           wqkv_ref, bqkv_ref, wo_ref, bo_ref,
                           wc_ref, bc_ref, gc_ref, bec_ref,
                           wcf_ref, bcf_ref,
                           # outputs
                           logical_ref, attnw_ref, causal_ref, conf_ref):
    N, H = x_ref.shape                     # N = bblk * S
    hd = H // num_heads

    x = x_ref[...]                         # (N, H) f32
    xb = x.astype(jnp.bfloat16)

    # ---- logical_layer: Linear(H,2H) -> LayerNorm -> ReLU -> Linear(2H,H) ----
    h1 = jnp.dot(xb, w1_ref[...], preferred_element_type=jnp.float32) + b1_ref[...]
    h1 = _layer_norm(h1, g1_ref[...], be1_ref[...])
    h1 = jnp.maximum(h1, 0.0)
    logical = jnp.dot(h1.astype(jnp.bfloat16), w2_ref[...],
                      preferred_element_type=jnp.float32) + b2_ref[...]
    logical_ref[...] = logical

    # ---- pattern_recognition: MultiheadAttention(x, x, x), batch_first ----
    # Scale 1/sqrt(hd) already folded into the Q columns of wqkv/bqkv on host.
    qkv = jnp.dot(xb, wqkv_ref[...], preferred_element_type=jnp.float32) + bqkv_ref[...]
    q = qkv[:, :H].reshape(bblk, S, H).astype(jnp.bfloat16)
    k = qkv[:, H:2 * H].reshape(bblk, S, H).astype(jnp.bfloat16)
    v = qkv[:, 2 * H:].reshape(bblk, S, H).astype(jnp.bfloat16)

    attn_sum = jnp.zeros((bblk, S, S), jnp.float32)
    ctx_heads = []
    for h in range(num_heads):                       # static, small head loop
        qh = q[:, :, h * hd:(h + 1) * hd]
        kh = k[:, :, h * hd:(h + 1) * hd]
        vh = v[:, :, h * hd:(h + 1) * hd]
        s = jnp.einsum('bqd,bkd->bqk', qh, kh, preferred_element_type=jnp.float32)
        s = s - jnp.max(s, axis=-1, keepdims=True)
        e = jnp.exp(s)
        p = e * pl.reciprocal(jnp.sum(e, axis=-1, keepdims=True), approx=True)
        attn_sum = attn_sum + p
        ctx_heads.append(jnp.einsum('bqk,bkd->bqd', p.astype(jnp.bfloat16), vh,
                                    preferred_element_type=jnp.float32))
    attnw_ref[...] = attn_sum * (1.0 / num_heads)    # head-averaged attn weights

    ctx = jnp.concatenate(ctx_heads, axis=-1).reshape(N, H)
    pattern = jnp.dot(ctx.astype(jnp.bfloat16), wo_ref[...],
                      preferred_element_type=jnp.float32) + bo_ref[...]

    # ---- causal_inference: Linear(cat(logical, pattern)) -> LN -> ReLU ----
    c = (jnp.dot(logical.astype(jnp.bfloat16), wc_ref[:H, :],
                 preferred_element_type=jnp.float32)
         + jnp.dot(pattern.astype(jnp.bfloat16), wc_ref[H:, :],
                   preferred_element_type=jnp.float32)
         + bc_ref[...])
    c = _layer_norm(c, gc_ref[...], bec_ref[...])
    c = jnp.maximum(c, 0.0)
    causal_ref[...] = c

    # ---- confidence_estimator: Linear(cat(logical, pattern, causal), 1) -> Sigmoid
    # Computed as a VPU broadcast-multiply + lane reduce (no 1-column MXU dot).
    wcf = wcf_ref[...]                               # (1, 3H) f32
    z = (jnp.sum(logical * wcf[:, :H], axis=-1, keepdims=True)
         + jnp.sum(pattern * wcf[:, H:2 * H], axis=-1, keepdims=True)
         + jnp.sum(c * wcf[:, 2 * H:], axis=-1, keepdims=True)
         + bcf_ref[...])
    conf_ref[...] = jax.nn.sigmoid(z)


def init_params(key, hidden_dim):
    H = hidden_dim
    ks = jax.random.split(key, 8)
    n = lambda k, shape: (0.05 * jax.random.normal(k, shape)).astype(jnp.float32)
    return dict(
        # logical_layer
        w1=n(ks[0], (H, 2 * H)), b1=jnp.zeros((1, 2 * H), jnp.float32),
        g1=jnp.ones((1, 2 * H), jnp.float32), be1=jnp.zeros((1, 2 * H), jnp.float32),
        w2=n(ks[1], (2 * H, H)), b2=jnp.zeros((1, H), jnp.float32),
        # multihead attention (in_proj transposed to (H, 3H), out_proj to (H, H))
        wqkv=n(ks[2], (H, 3 * H)), bqkv=jnp.zeros((1, 3 * H), jnp.float32),
        wo=n(ks[3], (H, H)), bo=jnp.zeros((1, H), jnp.float32),
        # causal_inference
        wc=n(ks[4], (2 * H, H)), bc=jnp.zeros((1, H), jnp.float32),
        gc=jnp.ones((1, H), jnp.float32), bec=jnp.zeros((1, H), jnp.float32),
        # confidence_estimator
        wcf=n(ks[5], (3 * H, 1)), bcf=jnp.zeros((1, 1), jnp.float32),
    )


def _pick_bblk(B, S):
    """Fold as many batches per grid step as fills ~256 MXU rows."""
    target = max(1, 256 // max(S, 1))
    candidates = [d for d in range(1, B + 1)
                  if B % d == 0 and ((d * S) % 8 == 0 or d == B)]
    fits = [d for d in candidates if d <= target]
    if fits:
        return max(fits)
    return min(candidates) if candidates else B


def basic_reasoning_forward(x, params, num_heads=4):
    B, S, H = x.shape
    assert H % num_heads == 0
    hd = H // num_heads
    bblk = _pick_bblk(B, S)
    grid = (B // bblk,)
    rows = bblk * S

    # Host-side prep: fold softmax scale into Q projection; cast MXU weights to bf16
    # (halves HBM->VMEM weight DMA). Biases / LN params / confidence weights stay f32.
    scale = 1.0 / math.sqrt(hd)
    wqkv = params["wqkv"].at[:, :H].multiply(scale)
    bqkv = params["bqkv"].at[:, :H].multiply(scale)
    bf16 = lambda a: a.astype(jnp.bfloat16)
    param_vals = [
        bf16(params["w1"]), params["b1"], params["g1"], params["be1"],
        bf16(params["w2"]), params["b2"],
        bf16(wqkv), bqkv, bf16(params["wo"]), params["bo"],
        bf16(params["wc"]), params["bc"], params["gc"], params["bec"],
        params["wcf"].reshape(1, 3 * H), params["bcf"],
    ]

    x2 = x.reshape(B * S, H)

    full = lambda p: pl.BlockSpec(p.shape, lambda b: (0,) * p.ndim)
    in_specs = [pl.BlockSpec((rows, H), lambda b: (b, 0))] + [full(p) for p in param_vals]
    out_specs = [
        pl.BlockSpec((rows, H), lambda b: (b, 0)),        # logical_out (flattened)
        pl.BlockSpec((bblk, S, S), lambda b: (b, 0, 0)),  # head-averaged attn weights
        pl.BlockSpec((rows, H), lambda b: (b, 0)),        # causal_out (flattened)
        pl.BlockSpec((rows, 1), lambda b: (b, 0)),        # confidence (flattened)
    ]
    out_shape = (
        jax.ShapeDtypeStruct((B * S, H), jnp.float32),
        jax.ShapeDtypeStruct((B, S, S), jnp.float32),
        jax.ShapeDtypeStruct((B * S, H), jnp.float32),
        jax.ShapeDtypeStruct((B * S, 1), jnp.float32),
    )

    # NOTE: with B=2, S=8 everything folds into a single grid step; on v7x with
    # larger B the "parallel" batch axis shards across both TensorCores.
    logical2, attn_w, causal2, conf2 = pl.pallas_call(
        functools.partial(basic_reasoning_kernel, num_heads, bblk, S),
        out_shape=out_shape,
        grid=grid,
        in_specs=in_specs,
        out_specs=out_specs,
        compiler_params=pltpu.CompilerParams(
            dimension_semantics=("parallel",)),
    )(x2, *param_vals)

    logical = logical2.reshape(B, S, H)
    causal = causal2.reshape(B, S, H)
    conf = conf2.reshape(B, S, 1)

    # ---- metrics (torch.no_grad block): tiny reductions, plain JAX glue ----
    def cosine_sim(a, b, eps=1e-8):
        num = jnp.sum(a * b, axis=-1)
        na = jnp.maximum(jnp.sqrt(jnp.sum(a * a, axis=-1)), eps)
        nb = jnp.maximum(jnp.sqrt(jnp.sum(b * b, axis=-1)), eps)
        return num / (na * nb)

    pattern_weights_norm = jax.nn.softmax(attn_w, axis=-1)   # re-softmax, as in torch code
    pattern_score = jnp.mean(pattern_weights_norm)
    logical_score = jnp.mean(jnp.clip((cosine_sim(logical, x) + 1.0) / 2.0, 0.0, 1.0))
    causal_score = jnp.mean(jnp.clip((cosine_sim(causal, x) + 1.0) / 2.0, 0.0, 1.0))

    # TODO(synk): PyTorch returns .item() host floats for the scores; here they stay JAX scalars.
    return {
        "output": causal,
        "confidence": conf,
        "metrics": {
            "logical_score": logical_score,
            "pattern_score": pattern_score,
            "causal_score": causal_score,
            "reasoning_weights": attn_w,
        },
    }


if __name__ == "__main__":
    B, S, H, NH = 2, 8, 32, 4
    key = jax.random.PRNGKey(0)
    kx, kp = jax.random.split(key)
    x = jax.random.normal(kx, (B, S, H), dtype=jnp.float32)
    params = init_params(kp, H)

    out = basic_reasoning_forward(x, params, num_heads=NH)
    jax.block_until_ready(out["output"])
    jax.block_until_ready(out["confidence"])
    jax.block_until_ready(out["metrics"]["reasoning_weights"])
    jax.block_until_ready(out["metrics"]["logical_score"])

    assert out["output"].shape == (B, S, H)
    assert out["confidence"].shape == (B, S, 1)
    assert out["metrics"]["reasoning_weights"].shape == (B, S, S)
    print("KERNEL_OK")
</pallas_src>

<mosaic_0001>
module attributes {stable_mosaic.version = 11 : i64} {
  func.func @basic_reasoning_kernel(%arg0: i32, %arg1: memref<16x32xf32, #tpu.memory_space<vmem>>, %arg2: memref<32x64xbf16, #tpu.memory_space<vmem>>, %arg3: memref<1x64xf32, #tpu.memory_space<vmem>>, %arg4: memref<1x64xf32, #tpu.memory_space<vmem>>, %arg5: memref<1x64xf32, #tpu.memory_space<vmem>>, %arg6: memref<64x32xbf16, #tpu.memory_space<vmem>>, %arg7: memref<1x32xf32, #tpu.memory_space<vmem>>, %arg8: memref<32x96xbf16, #tpu.memory_space<vmem>>, %arg9: memref<1x96xf32, #tpu.memory_space<vmem>>, %arg10: memref<32x32xbf16, #tpu.memory_space<vmem>>, %arg11: memref<1x32xf32, #tpu.memory_space<vmem>>, %arg12: memref<64x32xbf16, #tpu.memory_space<vmem>>, %arg13: memref<1x32xf32, #tpu.memory_space<vmem>>, %arg14: memref<1x32xf32, #tpu.memory_space<vmem>>, %arg15: memref<1x32xf32, #tpu.memory_space<vmem>>, %arg16: memref<1x96xf32, #tpu.memory_space<vmem>>, %arg17: memref<1x1xf32, #tpu.memory_space<vmem>>, %arg18: memref<16x32xf32, #tpu.memory_space<vmem>>, %arg19: memref<2x8x8xf32, #tpu.memory_space<vmem>>, %arg20: memref<16x32xf32, #tpu.memory_space<vmem>>, %arg21: memref<16x1xf32, #tpu.memory_space<vmem>>) attributes {dimension_semantics = [#tpu.dimension_semantics<parallel>], iteration_bounds = array<i64: 1>, scalar_prefetch = 0 : i64, scratch_operands = 0 : i64, tpu.core_type = #tpu.core_type<tc>, window_params = [{transform_indices = @transform_0, window_bounds = array<i64: 16, 32>}, {pipeline_mode = #tpu.pipeline_mode<synchronous>, transform_indices = @transform_1, window_bounds = array<i64: 32, 64>}, {pipeline_mode = #tpu.pipeline_mode<synchronous>, transform_indices = @transform_2, window_bounds = array<i64: 1, 64>}, {pipeline_mode = #tpu.pipeline_mode<synchronous>, transform_indices = @transform_3, window_bounds = array<i64: 1, 64>}, {pipeline_mode = #tpu.pipeline_mode<synchronous>, transform_indices = @transform_4, window_bounds = array<i64: 1, 64>}, {pipeline_mode = #tpu.pipeline_mode<synchronous>, transform_indices = @transform_5, window_bounds = array<i64: 64, 32>}, {pipeline_mode = #tpu.pipeline_mode<synchronous>, transform_indices = @transform_6, window_bounds = array<i64: 1, 32>}, {pipeline_mode = #tpu.pipeline_mode<synchronous>, transform_indices = @transform_7, window_bounds = array<i64: 32, 96>}, {pipeline_mode = #tpu.pipeline_mode<synchronous>, transform_indices = @transform_8, window_bounds = array<i64: 1, 96>}, {pipeline_mode = #tpu.pipeline_mode<synchronous>, transform_indices = @transform_9, window_bounds = array<i64: 32, 32>}, {pipeline_mode = #tpu.pipeline_mode<synchronous>, transform_indices = @transform_10, window_bounds = array<i64: 1, 32>}, {pipeline_mode = #tpu.pipeline_mode<synchronous>, transform_indices = @transform_11, window_bounds = array<i64: 64, 32>}, {pipeline_mode = #tpu.pipeline_mode<synchronous>, transform_indices = @transform_12, window_bounds = array<i64: 1, 32>}, {pipeline_mode = #tpu.pipeline_mode<synchronous>, transform_indices = @transform_13, window_bounds = array<i64: 1, 32>}, {pipeline_mode = #tpu.pipeline_mode<synchronous>, transform_indices = @transform_14, window_bounds = array<i64: 1, 32>}, {pipeline_mode = #tpu.pipeline_mode<synchronous>, transform_indices = @transform_15, window_bounds = array<i64: 1, 96>}, {pipeline_mode = #tpu.pipeline_mode<synchronous>, transform_indices = @transform_16, window_bounds = array<i64: 1, 1>}, {transform_indices = @transform_17, window_bounds = array<i64: 16, 32>}, {transform_indices = @transform_18, window_bounds = array<i64: 2, 8, 8>}, {transform_indices = @transform_19, window_bounds = array<i64: 16, 32>}, {transform_indices = @transform_20, window_bounds = array<i64: 16, 1>}]} {
    %c0 = arith.constant 0 : index
    %c0_0 = arith.constant 0 : index
    %0 = vector.load %arg1[%c0, %c0_0] : memref<16x32xf32, #tpu.memory_space<vmem>>, vector<16x32xf32>
    %1 = arith.truncf %0 : vector<16x32xf32> to vector<16x32xbf16>
    %c0_1 = arith.constant 0 : index
    %c0_2 = arith.constant 0 : index
    %2 = vector.load %arg2[%c0_1, %c0_2] : memref<32x64xbf16, #tpu.memory_space<vmem>>, vector<32x64xbf16>
    %cst = arith.constant dense<0.000000e+00> : vector<16x64xf32>
    %3 = tpu.matmul %1, %2, %cst {dimension_numbers = #tpu.dot_dimension_numbers<[1], [0], [0], [1], [0, 0, 1, 1], [], []>} : vector<16x32xbf16>, vector<32x64xbf16>, vector<16x64xf32> -> vector<16x64xf32>
    %c0_3 = arith.constant 0 : index
    %c0_4 = arith.constant 0 : index
    %4 = vector.load %arg3[%c0_3, %c0_4] : memref<1x64xf32, #tpu.memory_space<vmem>>, vector<1x64xf32>
    %5 = vector.broadcast %4 : vector<1x64xf32> to vector<16x64xf32>
    %6 = arith.addf %3, %5 : vector<16x64xf32>
    %c0_5 = arith.constant 0 : index
    %c0_6 = arith.constant 0 : index
    %7 = vector.load %arg4[%c0_5, %c0_6] : memref<1x64xf32, #tpu.memory_space<vmem>>, vector<1x64xf32>
    %c0_7 = arith.constant 0 : index
    %c0_8 = arith.constant 0 : index
    %8 = vector.load %arg5[%c0_7, %c0_8] : memref<1x64xf32, #tpu.memory_space<vmem>>, vector<1x64xf32>
    %cst_9 = arith.constant dense<0.000000e+00> : vector<16xf32>
    %9 = vector.multi_reduction <add>, %6, %cst_9 [1] : vector<16x64xf32> to vector<16xf32>
    %10 = vector.shape_cast %9 : vector<16xf32> to vector<16x1xf32>
    %cst_10 = arith.constant 6.400000e+01 : f32
    %11 = vector.broadcast %cst_10 : f32 to vector<16x1xf32>
    %12 = arith.divf %10, %11 : vector<16x1xf32>
    %13 = vector.broadcast %12 : vector<16x1xf32> to vector<16x64xf32>
    %14 = arith.subf %6, %13 : vector<16x64xf32>
    %15 = arith.mulf %14, %14 : vector<16x64xf32>
    %cst_11 = arith.constant dense<0.000000e+00> : vector<16xf32>
    %16 = vector.multi_reduction <add>, %15, %cst_11 [1] : vector<16x64xf32> to vector<16xf32>
    %17 = vector.shape_cast %16 : vector<16xf32> to vector<16x1xf32>
    %cst_12 = arith.constant 6.400000e+01 : f32
    %18 = vector.broadcast %cst_12 : f32 to vector<16x1xf32>
    %19 = arith.divf %17, %18 : vector<16x1xf32>
    %20 = vector.broadcast %12 : vector<16x1xf32> to vector<16x64xf32>
    %21 = arith.subf %6, %20 : vector<16x64xf32>
    %cst_13 = arith.constant 9.99999974E-6 : f32
    %22 = vector.broadcast %cst_13 : f32 to vector<16x1xf32>
    %23 = arith.addf %19, %22 : vector<16x1xf32>
    %24 = math.rsqrt %23 : vector<16x1xf32>
    %25 = vector.broadcast %24 : vector<16x1xf32> to vector<16x64xf32>
    %26 = arith.mulf %21, %25 : vector<16x64xf32>
    %27 = vector.broadcast %7 : vector<1x64xf32> to vector<16x64xf32>
    %28 = arith.mulf %26, %27 : vector<16x64xf32>
    %29 = vector.broadcast %8 : vector<1x64xf32> to vector<16x64xf32>
    %30 = arith.addf %28, %29 : vector<16x64xf32>
    %cst_14 = arith.constant 0.000000e+00 : f32
    %31 = vector.broadcast %cst_14 : f32 to vector<16x64xf32>
    %32 = arith.maximumf %30, %31 : vector<16x64xf32>
    %33 = arith.truncf %32 : vector<16x64xf32> to vector<16x64xbf16>
    %c0_15 = arith.constant 0 : index
    %c0_16 = arith.constant 0 : index
    %34 = vector.load %arg6[%c0_15, %c0_16] : memref<64x32xbf16, #tpu.memory_space<vmem>>, vector<64x32xbf16>
    %cst_17 = arith.constant dense<0.000000e+00> : vector<16x32xf32>
    %35 = tpu.matmul %33, %34, %cst_17 {dimension_numbers = #tpu.dot_dimension_numbers<[1], [0], [0], [1], [0, 0, 1, 1], [], []>} : vector<16x64xbf16>, vector<64x32xbf16>, vector<16x32xf32> -> vector<16x32xf32>
    %c0_18 = arith.constant 0 : index
    %c0_19 = arith.constant 0 : index
    %36 = vector.load %arg7[%c0_18, %c0_19] : memref<1x32xf32, #tpu.memory_space<vmem>>, vector<1x32xf32>
    %37 = vector.broadcast %36 : vector<1x32xf32> to vector<16x32xf32>
    %38 = arith.addf %35, %37 : vector<16x32xf32>
    %c0_20 = arith.constant 0 : index
    %c0_21 = arith.constant 0 : index
    %39 = vector.load %arg18[%c0_20, %c0_21] : memref<16x32xf32, #tpu.memory_space<vmem>>, vector<16x32xf32>
    tpu.vector_store %arg18[%c0_20, %c0_21], %38 {strides = array<i32>} : memref<16x32xf32, #tpu.memory_space<vmem>>, vector<16x32xf32>,
    %c0_22 = arith.constant 0 : index
    %c0_23 = arith.constant 0 : index
    %40 = vector.load %arg8[%c0_22, %c0_23] : memref<32x96xbf16, #tpu.memory_space<vmem>>, vector<32x96xbf16>
    %cst_24 = arith.constant dense<0.000000e+00> : vector<16x96xf32>
    %41 = tpu.matmul %1, %40, %cst_24 {dimension_numbers = #tpu.dot_dimension_numbers<[1], [0], [0], [1], [0, 0, 1, 1], [], []>} : vector<16x32xbf16>, vector<32x96xbf16>, vector<16x96xf32> -> vector<16x96xf32>
    %c0_25 = arith.constant 0 : index
    %c0_26 = arith.constant 0 : index
    %42 = vector.load %arg9[%c0_25, %c0_26] : memref<1x96xf32, #tpu.memory_space<vmem>>, vector<1x96xf32>
    %43 = vector.broadcast %42 : vector<1x96xf32> to vector<16x96xf32>
    %44 = arith.addf %41, %43 : vector<16x96xf32>
    %45 = vector.extract_strided_slice %44 {offsets = [0, 0], sizes = [16, 32], strides = [1, 1]} : vector<16x96xf32> to vector<16x32xf32>
    %46 = vector.shape_cast %45 : vector<16x32xf32> to vector<2x8x32xf32>
    %47 = arith.truncf %46 : vector<2x8x32xf32> to vector<2x8x32xbf16>
    %48 = vector.extract_strided_slice %44 {offsets = [0, 32], sizes = [16, 32], strides = [1, 1]} : vector<16x96xf32> to vector<16x32xf32>
    %49 = vector.shape_cast %48 : vector<16x32xf32> to vector<2x8x32xf32>
    %50 = arith.truncf %49 : vector<2x8x32xf32> to vector<2x8x32xbf16>
    %51 = vector.extract_strided_slice %44 {offsets = [0, 64], sizes = [16, 32], strides = [1, 1]} : vector<16x96xf32> to vector<16x32xf32>
    %52 = vector.shape_cast %51 : vector<16x32xf32> to vector<2x8x32xf32>
    %53 = arith.truncf %52 : vector<2x8x32xf32> to vector<2x8x32xbf16>
    %cst_27 = arith.constant 0.000000e+00 : f32
    %54 = vector.broadcast %cst_27 : f32 to vector<2x8x8xf32>
    %55 = vector.extract_strided_slice %47 {offsets = [0, 0, 0], sizes = [2, 8, 8], strides = [1, 1, 1]} : vector<2x8x32xbf16> to vector<2x8x8xbf16>
    %56 = vector.extract_strided_slice %50 {offsets = [0, 0, 0], sizes = [2, 8, 8], strides = [1, 1, 1]} : vector<2x8x32xbf16> to vector<2x8x8xbf16>
    %57 = vector.extract_strided_slice %53 {offsets = [0, 0, 0], sizes = [2, 8, 8], strides = [1, 1, 1]} : vector<2x8x32xbf16> to vector<2x8x8xbf16>
    "tpu.trace_start"() <{level = 10 : i32, message = "bqd,bkd->bqk"}> : () -> ()
    %cst_28 = arith.constant dense<0.000000e+00> : vector<2x8x8xf32>
    %58 = tpu.matmul %55, %56, %cst_28 {dimension_numbers = #tpu.dot_dimension_numbers<[2], [2], [1], [1], [0, 0, 0, 1, 1, 1], [0], [0]>} : vector<2x8x8xbf16>, vector<2x8x8xbf16>, vector<2x8x8xf32> -> vector<2x8x8xf32>
    "tpu.trace_stop"() : () -> ()
    %cst_29 = arith.constant dense<0xFF800000> : vector<2x8xf32>
    %59 = vector.multi_reduction <maximumf>, %58, %cst_29 [2] : vector<2x8x8xf32> to vector<2x8xf32>
    %60 = vector.shape_cast %59 : vector<2x8xf32> to vector<2x8x1xf32>
    %61 = vector.broadcast %60 : vector<2x8x1xf32> to vector<2x8x8xf32>
    %62 = arith.subf %58, %61 : vector<2x8x8xf32>
    %63 = math.exp %62 : vector<2x8x8xf32>
    %cst_30 = arith.constant dense<0.000000e+00> : vector<2x8xf32>
    %64 = vector.multi_reduction <add>, %63, %cst_30 [2] : vector<2x8x8xf32> to vector<2x8xf32>
    %65 = vector.shape_cast %64 : vector<2x8xf32> to vector<2x8x1xf32>
    %66 = tpu.reciprocal %65 {approx = true} : vector<2x8x1xf32> -> vector<2x8x1xf32>
    %67 = vector.broadcast %66 : vector<2x8x1xf32> to vector<2x8x8xf32>
    %68 = arith.mulf %63, %67 : vector<2x8x8xf32>
    %69 = arith.addf %54, %68 : vector<2x8x8xf32>
    %70 = arith.truncf %68 : vector<2x8x8xf32> to vector<2x8x8xbf16>
    "tpu.trace_start"() <{level = 10 : i32, message = "bqk,bkd->bqd"}> : () -> ()
    %cst_31 = arith.constant dense<0.000000e+00> : vector<2x8x8xf32>
    %71 = tpu.matmul %70, %57, %cst_31 {dimension_numbers = #tpu.dot_dimension_numbers<[2], [1], [1], [2], [0, 0, 0, 1, 1, 2], [0], [0]>} : vector<2x8x8xbf16>, vector<2x8x8xbf16>, vector<2x8x8xf32> -> vector<2x8x8xf32>
    "tpu.trace_stop"() : () -> ()
    %72 = vector.extract_strided_slice %47 {offsets = [0, 0, 8], sizes = [2, 8, 8], strides = [1, 1, 1]} : vector<2x8x32xbf16> to vector<2x8x8xbf16>
    %73 = vector.extract_strided_slice %50 {offsets = [0, 0, 8], sizes = [2, 8, 8], strides = [1, 1, 1]} : vector<2x8x32xbf16> to vector<2x8x8xbf16>
    %74 = vector.extract_strided_slice %53 {offsets = [0, 0, 8], sizes = [2, 8, 8], strides = [1, 1, 1]} : vector<2x8x32xbf16> to vector<2x8x8xbf16>
    "tpu.trace_start"() <{level = 10 : i32, message = "bqd,bkd->bqk"}> : () -> ()
    %cst_32 = arith.constant dense<0.000000e+00> : vector<2x8x8xf32>
    %75 = tpu.matmul %72, %73, %cst_32 {dimension_numbers = #tpu.dot_dimension_numbers<[2], [2], [1], [1], [0, 0, 0, 1, 1, 1], [0], [0]>} : vector<2x8x8xbf16>, vector<2x8x8xbf16>, vector<2x8x8xf32> -> vector<2x8x8xf32>
    "tpu.trace_stop"() : () -> ()
    %cst_33 = arith.constant dense<0xFF800000> : vector<2x8xf32>
    %76 = vector.multi_reduction <maximumf>, %75, %cst_33 [2] : vector<2x8x8xf32> to vector<2x8xf32>
    %77 = vector.shape_cast %76 : vector<2x8xf32> to vector<2x8x1xf32>
    %78 = vector.broadcast %77 : vector<2x8x1xf32> to vector<2x8x8xf32>
    %79 = arith.subf %75, %78 : vector<2x8x8xf32>
    %80 = math.exp %79 : vector<2x8x8xf32>
    %cst_34 = arith.constant dense<0.000000e+00> : vector<2x8xf32>
    %81 = vector.multi_reduction <add>, %80, %cst_34 [2] : vector<2x8x8xf32> to vector<2x8xf32>
    %82 = vector.shape_cast %81 : vector<2x8xf32> to vector<2x8x1xf32>
    %83 = tpu.reciprocal %82 {approx = true} : vector<2x8x1xf32> -> vector<2x8x1xf32>
    %84 = vector.broadcast %83 : vector<2x8x1xf32> to vector<2x8x8xf32>
    %85 = arith.mulf %80, %84 : vector<2x8x8xf32>
    %86 = arith.addf %69, %85 : vector<2x8x8xf32>
    %87 = arith.truncf %85 : vector<2x8x8xf32> to vector<2x8x8xbf16>
    "tpu.trace_start"() <{level = 10 : i32, message = "bqk,bkd->bqd"}> : () -> ()
    %cst_35 = arith.constant dense<0.000000e+00> : vector<2x8x8xf32>
    %88 = tpu.matmul %87, %74, %cst_35 {dimension_numbers = #tpu.dot_dimension_numbers<[2], [1], [1], [2], [0, 0, 0, 1, 1, 2], [0], [0]>} : vector<2x8x8xbf16>, vector<2x8x8xbf16>, vector<2x8x8xf32> -> vector<2x8x8xf32>
    "tpu.trace_stop"() : () -> ()
    %89 = vector.extract_strided_slice %47 {offsets = [0, 0, 16], sizes = [2, 8, 8], strides = [1, 1, 1]} : vector<2x8x32xbf16> to vector<2x8x8xbf16>
    %90 = vector.extract_strided_slice %50 {offsets = [0, 0, 16], sizes = [2, 8, 8], strides = [1, 1, 1]} : vector<2x8x32xbf16> to vector<2x8x8xbf16>
    %91 = vector.extract_strided_slice %53 {offsets = [0, 0, 16], sizes = [2, 8, 8], strides = [1, 1, 1]} : vector<2x8x32xbf16> to vector<2x8x8xbf16>
    "tpu.trace_start"() <{level = 10 : i32, message = "bqd,bkd->bqk"}> : () -> ()
    %cst_36 = arith.constant dense<0.000000e+00> : vector<2x8x8xf32>
    %92 = tpu.matmul %89, %90, %cst_36 {dimension_numbers = #tpu.dot_dimension_numbers<[2], [2], [1], [1], [0, 0, 0, 1, 1, 1], [0], [0]>} : vector<2x8x8xbf16>, vector<2x8x8xbf16>, vector<2x8x8xf32> -> vector<2x8x8xf32>
    "tpu.trace_stop"() : () -> ()
    %cst_37 = arith.constant dense<0xFF800000> : vector<2x8xf32>
    %93 = vector.multi_reduction <maximumf>, %92, %cst_37 [2] : vector<2x8x8xf32> to vector<2x8xf32>
    %94 = vector.shape_cast %93 : vector<2x8xf32> to vector<2x8x1xf32>
    %95 = vector.broadcast %94 : vector<2x8x1xf32> to vector<2x8x8xf32>
    %96 = arith.subf %92, %95 : vector<2x8x8xf32>
    %97 = math.exp %96 : vector<2x8x8xf32>
    %cst_38 = arith.constant dense<0.000000e+00> : vector<2x8xf32>
    %98 = vector.multi_reduction <add>, %97, %cst_38 [2] : vector<2x8x8xf32> to vector<2x8xf32>
    %99 = vector.shape_cast %98 : vector<2x8xf32> to vector<2x8x1xf32>
    %100 = tpu.reciprocal %99 {approx = true} : vector<2x8x1xf32> -> vector<2x8x1xf32>
    %101 = vector.broadcast %100 : vector<2x8x1xf32> to vector<2x8x8xf32>
    %102 = arith.mulf %97, %101 : vector<2x8x8xf32>
    %103 = arith.addf %86, %102 : vector<2x8x8xf32>
    %104 = arith.truncf %102 : vector<2x8x8xf32> to vector<2x8x8xbf16>
    "tpu.trace_start"() <{level = 10 : i32, message = "bqk,bkd->bqd"}> : () -> ()
    %cst_39 = arith.constant dense<0.000000e+00> : vector<2x8x8xf32>
    %105 = tpu.matmul %104, %91, %cst_39 {dimension_numbers = #tpu.dot_dimension_numbers<[2], [1], [1], [2], [0, 0, 0, 1, 1, 2], [0], [0]>} : vector<2x8x8xbf16>, vector<2x8x8xbf16>, vector<2x8x8xf32> -> vector<2x8x8xf32>
    "tpu.trace_stop"() : () -> ()
    %106 = vector.extract_strided_slice %47 {offsets = [0, 0, 24], sizes = [2, 8, 8], strides = [1, 1, 1]} : vector<2x8x32xbf16> to vector<2x8x8xbf16>
    %107 = vector.extract_strided_slice %50 {offsets = [0, 0, 24], sizes = [2, 8, 8], strides = [1, 1, 1]} : vector<2x8x32xbf16> to vector<2x8x8xbf16>
    %108 = vector.extract_strided_slice %53 {offsets = [0, 0, 24], sizes = [2, 8, 8], strides = [1, 1, 1]} : vector<2x8x32xbf16> to vector<2x8x8xbf16>
    "tpu.trace_start"() <{level = 10 : i32, message = "bqd,bkd->bqk"}> : () -> ()
    %cst_40 = arith.constant dense<0.000000e+00> : vector<2x8x8xf32>
    %109 = tpu.matmul %106, %107, %cst_40 {dimension_numbers = #tpu.dot_dimension_numbers<[2], [2], [1], [1], [0, 0, 0, 1, 1, 1], [0], [0]>} : vector<2x8x8xbf16>, vector<2x8x8xbf16>, vector<2x8x8xf32> -> vector<2x8x8xf32>
    "tpu.trace_stop"() : () -> ()
    %cst_41 = arith.constant dense<0xFF800000> : vector<2x8xf32>
    %110 = vector.multi_reduction <maximumf>, %109, %cst_41 [2] : vector<2x8x8xf32> to vector<2x8xf32>
    %111 = vector.shape_cast %110 : vector<2x8xf32> to vector<2x8x1xf32>
    %112 = vector.broadcast %111 : vector<2x8x1xf32> to vector<2x8x8xf32>
    %113 = arith.subf %109, %112 : vector<2x8x8xf32>
    %114 = math.exp %113 : vector<2x8x8xf32>
    %cst_42 = arith.constant dense<0.000000e+00> : vector<2x8xf32>
    %115 = vector.multi_reduction <add>, %114, %cst_42 [2] : vector<2x8x8xf32> to vector<2x8xf32>
    %116 = vector.shape_cast %115 : vector<2x8xf32> to vector<2x8x1xf32>
    %117 = tpu.reciprocal %116 {approx = true} : vector<2x8x1xf32> -> vector<2x8x1xf32>
    %118 = vector.broadcast %117 : vector<2x8x1xf32> to vector<2x8x8xf32>
    %119 = arith.mulf %114, %118 : vector<2x8x8xf32>
    %120 = arith.addf %103, %119 : vector<2x8x8xf32>
    %121 = arith.truncf %119 : vector<2x8x8xf32> to vector<2x8x8xbf16>
    "tpu.trace_start"() <{level = 10 : i32, message = "bqk,bkd->bqd"}> : () -> ()
    %cst_43 = arith.constant dense<0.000000e+00> : vector<2x8x8xf32>
    %122 = tpu.matmul %121, %108, %cst_43 {dimension_numbers = #tpu.dot_dimension_numbers<[2], [1], [1], [2], [0, 0, 0, 1, 1, 2], [0], [0]>} : vector<2x8x8xbf16>, vector<2x8x8xbf16>, vector<2x8x8xf32> -> vector<2x8x8xf32>
    "tpu.trace_stop"() : () -> ()
    %cst_44 = arith.constant 2.500000e-01 : f32
    %123 = vector.broadcast %cst_44 : f32 to vector<2x8x8xf32>
    %124 = arith.mulf %120, %123 : vector<2x8x8xf32>
    %c0_45 = arith.constant 0 : index
    %c0_46 = arith.constant 0 : index
    %c0_47 = arith.constant 0 : index
    %125 = vector.load %arg19[%c0_45, %c0_46, %c0_47] : memref<2x8x8xf32, #tpu.memory_space<vmem>>, vector<2x8x8xf32>
    tpu.vector_store %arg19[%c0_45, %c0_46, %c0_47], %124 {strides = array<i32>} : memref<2x8x8xf32, #tpu.memory_space<vmem>>, vector<2x8x8xf32>,
    %126 = tpu.concatenate %71, %88, %105, %122 in 2 : vector<2x8x8xf32>, vector<2x8x8xf32>, vector<2x8x8xf32>, vector<2x8x8xf32> -> vector<2x8x32xf32>
    %127 = vector.shape_cast %126 : vector<2x8x32xf32> to vector<16x32xf32>
    %128 = arith.truncf %127 : vector<16x32xf32> to vector<16x32xbf16>
    %c0_48 = arith.constant 0 : index
    %c0_49 = arith.constant 0 : index
    %129 = vector.load %arg10[%c0_48, %c0_49] : memref<32x32xbf16, #tpu.memory_space<vmem>>, vector<32x32xbf16>
    %cst_50 = arith.constant dense<0.000000e+00> : vector<16x32xf32>
    %130 = tpu.matmul %128, %129, %cst_50 {dimension_numbers = #tpu.dot_dimension_numbers<[1], [0], [0], [1], [0, 0, 1, 1], [], []>} : vector<16x32xbf16>, vector<32x32xbf16>, vector<16x32xf32> -> vector<16x32xf32>
    %c0_51 = arith.constant 0 : index
    %c0_52 = arith.constant 0 : index
    %131 = vector.load %arg11[%c0_51, %c0_52] : memref<1x32xf32, #tpu.memory_space<vmem>>, vector<1x32xf32>
    %132 = vector.broadcast %131 : vector<1x32xf32> to vector<16x32xf32>
    %133 = arith.addf %130, %132 : vector<16x32xf32>
    %134 = arith.truncf %38 : vector<16x32xf32> to vector<16x32xbf16>
    %c0_53 = arith.constant 0 : index
    %c0_54 = arith.constant 0 : index
    %135 = vector.load %arg12[%c0_53, %c0_54] : memref<64x32xbf16, #tpu.memory_space<vmem>>, vector<32x32xbf16>
    %cst_55 = arith.constant dense<0.000000e+00> : vector<16x32xf32>
    %136 = tpu.matmul %134, %135, %cst_55 {dimension_numbers = #tpu.dot_dimension_numbers<[1], [0], [0], [1], [0, 0, 1, 1], [], []>} : vector<16x32xbf16>, vector<32x32xbf16>, vector<16x32xf32> -> vector<16x32xf32>
    %137 = arith.truncf %133 : vector<16x32xf32> to vector<16x32xbf16>
    %c32 = arith.constant 32 : index
    %c0_56 = arith.constant 0 : index
    %138 = vector.load %arg12[%c32, %c0_56] : memref<64x32xbf16, #tpu.memory_space<vmem>>, vector<32x32xbf16>
    %cst_57 = arith.constant dense<0.000000e+00> : vector<16x32xf32>
    %139 = tpu.matmul %137, %138, %cst_57 {dimension_numbers = #tpu.dot_dimension_numbers<[1], [0], [0], [1], [0, 0, 1, 1], [], []>} : vector<16x32xbf16>, vector<32x32xbf16>, vector<16x32xf32> -> vector<16x32xf32>
    %140 = arith.addf %136, %139 : vector<16x32xf32>
    %c0_58 = arith.constant 0 : index
    %c0_59 = arith.constant 0 : index
    %141 = vector.load %arg13[%c0_58, %c0_59] : memref<1x32xf32, #tpu.memory_space<vmem>>, vector<1x32xf32>
    %142 = vector.broadcast %141 : vector<1x32xf32> to vector<16x32xf32>
    %143 = arith.addf %140, %142 : vector<16x32xf32>
    %c0_60 = arith.constant 0 : index
    %c0_61 = arith.constant 0 : index
    %144 = vector.load %arg14[%c0_60, %c0_61] : memref<1x32xf32, #tpu.memory_space<vmem>>, vector<1x32xf32>
    %c0_62 = arith.constant 0 : index
    %c0_63 = arith.constant 0 : index
    %145 = vector.load %arg15[%c0_62, %c0_63] : memref<1x32xf32, #tpu.memory_space<vmem>>, vector<1x32xf32>
    %cst_64 = arith.constant dense<0.000000e+00> : vector<16xf32>
    %146 = vector.multi_reduction <add>, %143, %cst_64 [1] : vector<16x32xf32> to vector<16xf32>
    %147 = vector.shape_cast %146 : vector<16xf32> to vector<16x1xf32>
    %cst_65 = arith.constant 3.200000e+01 : f32
    %148 = vector.broadcast %cst_65 : f32 to vector<16x1xf32>
    %149 = arith.divf %147, %148 : vector<16x1xf32>
    %150 = vector.broadcast %149 : vector<16x1xf32> to vector<16x32xf32>
    %151 = arith.subf %143, %150 : vector<16x32xf32>
    %152 = arith.mulf %151, %151 : vector<16x32xf32>
    %cst_66 = arith.constant dense<0.000000e+00> : vector<16xf32>
    %153 = vector.multi_reduction <add>, %152, %cst_66 [1] : vector<16x32xf32> to vector<16xf32>
    %154 = vector.shape_cast %153 : vector<16xf32> to vector<16x1xf32>
    %cst_67 = arith.constant 3.200000e+01 : f32
    %155 = vector.broadcast %cst_67 : f32 to vector<16x1xf32>
    %156 = arith.divf %154, %155 : vector<16x1xf32>
    %157 = vector.broadcast %149 : vector<16x1xf32> to vector<16x32xf32>
    %158 = arith.subf %143, %157 : vector<16x32xf32>
    %cst_68 = arith.constant 9.99999974E-6 : f32
    %159 = vector.broadcast %cst_68 : f32 to vector<16x1xf32>
    %160 = arith.addf %156, %159 : vector<16x1xf32>
    %161 = math.rsqrt %160 : vector<16x1xf32>
    %162 = vector.broadcast %161 : vector<16x1xf32> to vector<16x32xf32>
    %163 = arith.mulf %158, %162 : vector<16x32xf32>
    %164 = vector.broadcast %144 : vector<1x32xf32> to vector<16x32xf32>
    %165 = arith.mulf %163, %164 : vector<16x32xf32>
    %166 = vector.broadcast %145 : vector<1x32xf32> to vector<16x32xf32>
    %167 = arith.addf %165, %166 : vector<16x32xf32>
    %cst_69 = arith.constant 0.000000e+00 : f32
    %168 = vector.broadcast %cst_69 : f32 to vector<16x32xf32>
    %169 = arith.maximumf %167, %168 : vector<16x32xf32>
    %c0_70 = arith.constant 0 : index
    %c0_71 = arith.constant 0 : index
    %170 = vector.load %arg20[%c0_70, %c0_71] : memref<16x32xf32, #tpu.memory_space<vmem>>, vector<16x32xf32>
    tpu.vector_store %arg20[%c0_70, %c0_71], %169 {strides = array<i32>} : memref<16x32xf32, #tpu.memory_space<vmem>>, vector<16x32xf32>,
    %c0_72 = arith.constant 0 : index
    %c0_73 = arith.constant 0 : index
    %171 = vector.load %arg16[%c0_72, %c0_73] : memref<1x96xf32, #tpu.memory_space<vmem>>, vector<1x96xf32>
    %172 = vector.extract_strided_slice %171 {offsets = [0, 0], sizes = [1, 32], strides = [1, 1]} : vector<1x96xf32> to vector<1x32xf32>
    %173 = vector.broadcast %172 : vector<1x32xf32> to vector<16x32xf32>
    %174 = arith.mulf %38, %173 : vector<16x32xf32>
    %cst_74 = arith.constant dense<0.000000e+00> : vector<16xf32>
    %175 = vector.multi_reduction <add>, %174, %cst_74 [1] : vector<16x32xf32> to vector<16xf32>
    %176 = vector.shape_cast %175 : vector<16xf32> to vector<16x1xf32>
    %177 = vector.extract_strided_slice %171 {offsets = [0, 32], sizes = [1, 32], strides = [1, 1]} : vector<1x96xf32> to vector<1x32xf32>
    %178 = vector.broadcast %177 : vector<1x32xf32> to vector<16x32xf32>
    %179 = arith.mulf %133, %178 : vector<16x32xf32>
    %cst_75 = arith.constant dense<0.000000e+00> : vector<16xf32>
    %180 = vector.multi_reduction <add>, %179, %cst_75 [1] : vector<16x32xf32> to vector<16xf32>
    %181 = vector.shape_cast %180 : vector<16xf32> to vector<16x1xf32>
    %182 = arith.addf %176, %181 : vector<16x1xf32>
    %183 = vector.extract_strided_slice %171 {offsets = [0, 64], sizes = [1, 32], strides = [1, 1]} : vector<1x96xf32> to vector<1x32xf32>
    %184 = vector.broadcast %183 : vector<1x32xf32> to vector<16x32xf32>
    %185 = arith.mulf %169, %184 : vector<16x32xf32>
    %cst_76 = arith.constant dense<0.000000e+00> : vector<16xf32>
    %186 = vector.multi_reduction <add>, %185, %cst_76 [1] : vector<16x32xf32> to vector<16xf32>
    %187 = vector.shape_cast %186 : vector<16xf32> to vector<16x1xf32>
    %188 = arith.addf %182, %187 : vector<16x1xf32>
    %c0_77 = arith.constant 0 : index
    %c0_78 = arith.constant 0 : index
    %189 = vector.load %arg17[%c0_77, %c0_78] : memref<1x1xf32, #tpu.memory_space<vmem>>, vector<1x1xf32>
    %190 = vector.broadcast %189 : vector<1x1xf32> to vector<16x1xf32>
    %191 = arith.addf %188, %190 : vector<16x1xf32>
    %192 = arith.negf %191 : vector<16x1xf32>
    %193 = math.exp %192 : vector<16x1xf32>
    %cst_79 = arith.constant 1.000000e+00 : f32
    %194 = vector.broadcast %cst_79 : f32 to vector<16x1xf32>
    %195 = arith.addf %194, %193 : vector<16x1xf32>
    %196 = arith.divf %194, %195 : vector<16x1xf32>
    %c0_80 = arith.constant 0 : index
    %c0_81 = arith.constant 0 : index
    %197 = vector.load %arg21[%c0_80, %c0_81] : memref<16x1xf32, #tpu.memory_space<vmem>>, vector<16x1xf32>
    tpu.vector_store %arg21[%c0_80, %c0_81], %196 {strides = array<i32>} : memref<16x1xf32, #tpu.memory_space<vmem>>, vector<16x1xf32>,
    return
  }
  func.func @transform_0(%arg0: i32) -> (i32, i32) {
    %c0_i32 = arith.constant 0 : i32
    %c0_i32_0 = arith.constant 0 : i32
    return %arg0, %c0_i32 : i32, i32
  }
  func.func @transform_1(%arg0: i32) -> (i32, i32) {
    %c0_i32 = arith.constant 0 : i32
    %c0_i32_0 = arith.constant 0 : i32
    %c0_i32_1 = arith.constant 0 : i32
    return %c0_i32, %c0_i32_0 : i32, i32
  }
  func.func @transform_2(%arg0: i32) -> (i32, i32) {
    %c0_i32 = arith.constant 0 : i32
    %c0_i32_0 = arith.constant 0 : i32
    %c0_i32_1 = arith.constant 0 : i32
    return %c0_i32, %c0_i32_0 : i32, i32
  }
  func.func @transform_3(%arg0: i32) -> (i32, i32) {
    %c0_i32 = arith.constant 0 : i32
    %c0_i32_0 = arith.constant 0 : i32
    %c0_i32_1 = arith.constant 0 : i32
    return %c0_i32, %c0_i32_0 : i32, i32
  }
  func.func @transform_4(%arg0: i32) -> (i32, i32) {
    %c0_i32 = arith.constant 0 : i32
    %c0_i32_0 = arith.constant 0 : i32
    %c0_i32_1 = arith.constant 0 : i32
    return %c0_i32, %c0_i32_0 : i32, i32
  }
  func.func @transform_5(%arg0: i32) -> (i32, i32) {
    %c0_i32 = arith.constant 0 : i32
    %c0_i32_0 = arith.constant 0 : i32
    %c0_i32_1 = arith.constant 0 : i32
    return %c0_i32, %c0_i32_0 : i32, i32
  }
  func.func @transform_6(%arg0: i32) -> (i32, i32) {
    %c0_i32 = arith.constant 0 : i32
    %c0_i32_0 = arith.constant 0 : i32
    %c0_i32_1 = arith.constant 0 : i32
    return %c0_i32, %c0_i32_0 : i32, i32
  }
  func.func @transform_7(%arg0: i32) -> (i32, i32) {
    %c0_i32 = arith.constant 0 : i32
    %c0_i32_0 = arith.constant 0 : i32
    %c0_i32_1 = arith.constant 0 : i32
    return %c0_i32, %c0_i32_0 : i32, i32
  }
  func.func @transform_8(%arg0: i32) -> (i32, i32) {
    %c0_i32 = arith.constant 0 : i32
    %c0_i32_0 = arith.constant 0 : i32
    %c0_i32_1 = arith.constant 0 : i32
    return %c0_i32, %c0_i32_0 : i32, i32
  }
  func.func @transform_9(%arg0: i32) -> (i32, i32) {
    %c0_i32 = arith.constant 0 : i32
    %c0_i32_0 = arith.constant 0 : i32
    %c0_i32_1 = arith.constant 0 : i32
    return %c0_i32, %c0_i32_0 : i32, i32
  }
  func.func @transform_10(%arg0: i32) -> (i32, i32) {
    %c0_i32 = arith.constant 0 : i32
    %c0_i32_0 = arith.constant 0 : i32
    %c0_i32_1 = arith.constant 0 : i32
    return %c0_i32, %c0_i32_0 : i32, i32
  }
  func.func @transform_11(%arg0: i32) -> (i32, i32) {
    %c0_i32 = arith.constant 0 : i32
    %c0_i32_0 = arith.constant 0 : i32
    %c0_i32_1 = arith.constant 0 : i32
    return %c0_i32, %c0_i32_0 : i32, i32
  }
  func.func @transform_12(%arg0: i32) -> (i32, i32) {
    %c0_i32 = arith.constant 0 : i32
    %c0_i32_0 = arith.constant 0 : i32
    %c0_i32_1 = arith.constant 0 : i32
    return %c0_i32, %c0_i32_0 : i32, i32
  }
  func.func @transform_13(%arg0: i32) -> (i32, i32) {
    %c0_i32 = arith.constant 0 : i32
    %c0_i32_0 = arith.constant 0 : i32
    %c0_i32_1 = arith.constant 0 : i32
    return %c0_i32, %c0_i32_0 : i32, i32
  }
  func.func @transform_14(%arg0: i32) -> (i32, i32) {
    %c0_i32 = arith.constant 0 : i32
    %c0_i32_0 = arith.constant 0 : i32
    %c0_i32_1 = arith.constant 0 : i32
    return %c0_i32, %c0_i32_0 : i32, i32
  }
  func.func @transform_15(%arg0: i32) -> (i32, i32) {
    %c0_i32 = arith.constant 0 : i32
    %c0_i32_0 = arith.constant 0 : i32
    %c0_i32_1 = arith.constant 0 : i32
    return %c0_i32, %c0_i32_0 : i32, i32
  }
  func.func @transform_16(%arg0: i32) -> (i32, i32) {
    %c0_i32 = arith.constant 0 : i32
    %c0_i32_0 = arith.constant 0 : i32
    %c0_i32_1 = arith.constant 0 : i32
    return %c0_i32, %c0_i32_0 : i32, i32
  }
  func.func @transform_17(%arg0: i32) -> (i32, i32) {
    %c0_i32 = arith.constant 0 : i32
    %c0_i32_0 = arith.constant 0 : i32
    return %arg0, %c0_i32 : i32, i32
  }
  func.func @transform_18(%arg0: i32) -> (i32, i32, i32) {
    %c0_i32 = arith.constant 0 : i32
    %c0_i32_0 = arith.constant 0 : i32
    %c0_i32_1 = arith.constant 0 : i32
    return %arg0, %c0_i32, %c0_i32_0 : i32, i32, i32
  }
  func.func @transform_19(%arg0: i32) -> (i32, i32) {
    %c0_i32 = arith.constant 0 : i32
    %c0_i32_0 = arith.constant 0 : i32
    return %arg0, %c0_i32 : i32, i32
  }
  func.func @transform_20(%arg0: i32) -> (i32, i32) {
    %c0_i32 = arith.constant 0 : i32
    %c0_i32_0 = arith.constant 0 : i32
    return %arg0, %c0_i32 : i32, i32
  }
}

</mosaic_0001>

<llo_original>
// kernel: tpu_custom_call.1
$region0: #{tpu_custom_call.1}
  #allocation0 [shape = 'u32[]', space=smem, size = 0x4, offset = 0x4, fixed_abs, tag = 'smem constant byte address 0x4 - core index']
  #allocation1 [shape = 'u32[144,128]{1,0:T(1,128)}', space=vmem, size = 0x12000, scoped, tag = 'internal scratch']
  #allocation2 [shape = 'f32[1,1]{1,0:T(1,128)S(1)}', space=vmem, size = 0x200, scoped, tag = 'scoped memory for tpu_custom_call.1']
  %s0 = inlined_call_operand.vmem [shape: f32[16,32], index: 0, kind: input, shape index: {}]
  %s1 = inlined_call_operand.vmem [shape: bf16[32,64], index: 1, kind: input, shape index: {}]
  %s2 = inlined_call_operand.vmem [shape: f32[1,64], index: 2, kind: input, shape index: {}]
  %s3 = inlined_call_operand.vmem [shape: f32[1,64], index: 3, kind: input, shape index: {}]
  %s4 = inlined_call_operand.vmem [shape: f32[1,64], index: 4, kind: input, shape index: {}]
  %s5 = inlined_call_operand.vmem [shape: bf16[64,32], index: 5, kind: input, shape index: {}]
  %s6 = inlined_call_operand.vmem [shape: f32[1,32], index: 6, kind: input, shape index: {}]
  %s7 = inlined_call_operand.vmem [shape: bf16[32,96], index: 7, kind: input, shape index: {}]
  %s8 = inlined_call_operand.vmem [shape: f32[1,96], index: 8, kind: input, shape index: {}]
  %s9 = inlined_call_operand.vmem [shape: bf16[32,32], index: 9, kind: input, shape index: {}]
  %s10 = inlined_call_operand.vmem [shape: f32[1,32], index: 10, kind: input, shape index: {}]
  %s11 = inlined_call_operand.vmem [shape: bf16[64,32], index: 11, kind: input, shape index: {}]
  %s12 = inlined_call_operand.vmem [shape: f32[1,32], index: 12, kind: input, shape index: {}]
  %s13 = inlined_call_operand.vmem [shape: f32[1,32], index: 13, kind: input, shape index: {}]
  %s14 = inlined_call_operand.vmem [shape: f32[1,32], index: 14, kind: input, shape index: {}]
  %s15 = inlined_call_operand.vmem [shape: f32[1,96], index: 15, kind: input, shape index: {}]
  %s16 = inlined_call_operand.<no memory space> [shape: f32[1,1], index: 16, kind: input, shape index: {}]
  %s17 = inlined_call_operand.hbm [shape: f32[16,32], index: 17, kind: output, shape index: {0}]
  %s18 = inlined_call_operand.hbm [shape: f32[2,8,8], index: 18, kind: output, shape index: {1}]
  %s19 = inlined_call_operand.hbm [shape: f32[16,32], index: 19, kind: output, shape index: {2}]
  %s20 = inlined_call_operand.vmem [shape: f32[16,1], index: 20, kind: output, shape index: {3}]
  %21 = xla_tuple %s17, %s18, %s19, %s20
  %s22 = sld [smem:[#allocation0]]
  $region102: #{tpu_custom_call.1} parent=0
    _
  %s24 = ssub.s32 1, %s22
  %s25 = scalar_select 0, %s24, %s22
  %v26 = vstv %s16
  %27 = vst [vmem:[#allocation2] sm:$0x1] %v26
  $region1: #{tpu_custom_call.1} parent=0
    #allocation3 [shape = 'u8[8192]{0}', space=vmem, size = 0x2000, scoped, tag = 'output window, operand 0, single buffered']
    #allocation4 [shape = 's32[1]{0}', space=sflag, size = 0x4, scoped, tag = 'scoped memory for tpu_custom_call.1']
    #allocation5 [shape = 'u8[8192]{0}', space=vmem, size = 0x2000, scoped, tag = 'output window, operand 1, single buffered']
    #allocation6 [shape = 's32[1]{0}', space=sflag, size = 0x4, scoped, tag = 'scoped memory for tpu_custom_call.1']
    #allocation7 [shape = 'u8[8192]{0}', space=vmem, size = 0x2000, scoped, tag = 'output window, operand 2, single buffered']
    %28 = vsyncpa [#allocation4], 0
    %29 = vsyncpa [#allocation6], 0
    // Predicated region
    $region2: #{tpu_custom_call.1} parent=1 // pred_check
      _
    $region3: #{tpu_custom_call.1} parent=1 // pred_check_branch
      %31 = sbr.rel (0) target = $region5
    $region4: #{tpu_custom_call.1} parent=1 // pred_region
      _
    $region5: #{tpu_custom_call.1} parent=1 // pred_fallthru
      _
    // Predicated region
    $region6: #{tpu_custom_call.1} parent=1 // pred_check
      _
    $region7: #{tpu_custom_call.1} parent=1 // pred_check_branch
      %33 = sbr.rel (0) target = $region9
    $region8: #{tpu_custom_call.1} parent=1 // pred_region
      _
    $region9: #{tpu_custom_call.1} parent=1 // pred_fallthru
      _
    // Predicated region
    $region10: #{tpu_custom_call.1} parent=1 // pred_check
      _
    $region11: #{tpu_custom_call.1} parent=1 // pred_check_branch
      %35 = sbr.rel (0) target = $region13
    $region12: #{tpu_custom_call.1} parent=1 // pred_region
      _
    $region13: #{tpu_custom_call.1} parent=1 // pred_fallthru
      _
    // Predicated region
    $region14: #{tpu_custom_call.1} parent=1 // pred_check
      _
    $region15: #{tpu_custom_call.1} parent=1 // pred_check_branch
      %37 = sbr.rel (0) target = $region17
    $region16: #{tpu_custom_call.1} parent=1 // pred_region
      _
    $region17: #{tpu_custom_call.1} parent=1 // pred_fallthru
      _
    // Predicated region
    $region18: #{tpu_custom_call.1} parent=1 // pred_check
      _
    $region19: #{tpu_custom_call.1} parent=1 // pred_check_branch
      %39 = sbr.rel (0) target = $region21
    $region20: #{tpu_custom_call.1} parent=1 // pred_region
      _
    $region21: #{tpu_custom_call.1} parent=1 // pred_fallthru
      _
    // Predicated region
    $region22: #{tpu_custom_call.1} parent=1 // pred_check
      _
    $region23: #{tpu_custom_call.1} parent=1 // pred_check_branch
      %41 = sbr.rel (0) target = $region25
    $region24: #{tpu_custom_call.1} parent=1 // pred_region
      _
    $region25: #{tpu_custom_call.1} parent=1 // pred_fallthru
      _
    // Predicated region
    $region26: #{tpu_custom_call.1} parent=1 // pred_check
      _
    $region27: #{tpu_custom_call.1} parent=1 // pred_check_branch
      %43 = sbr.rel (0) target = $region29
    $region28: #{tpu_custom_call.1} parent=1 // pred_region
      _
    $region29: #{tpu_custom_call.1} parent=1 // pred_fallthru
      _
    // Predicated region
    $region30: #{tpu_custom_call.1} parent=1 // pred_check
      _
    $region31: #{tpu_custom_call.1} parent=1 // pred_check_branch
      %45 = sbr.rel (0) target = $region33
    $region32: #{tpu_custom_call.1} parent=1 // pred_region
      _
    $region33: #{tpu_custom_call.1} parent=1 // pred_fallthru
      _
    // Predicated region
    $region34: #{tpu_custom_call.1} parent=1 // pred_check
      _
    $region35: #{tpu_custom_call.1} parent=1 // pred_check_branch
      %47 = sbr.rel (0) target = $region37
    $region36: #{tpu_custom_call.1} parent=1 // pred_region
      _
    $region37: #{tpu_custom_call.1} parent=1 // pred_fallthru
      _
    // Predicated region
    $region38: #{tpu_custom_call.1} parent=1 // pred_check
      _
    $region39: #{tpu_custom_call.1} parent=1 // pred_check_branch
      %49 = sbr.rel (0) target = $region41
    $region40: #{tpu_custom_call.1} parent=1 // pred_region
      _
    $region41: #{tpu_custom_call.1} parent=1 // pred_fallthru
      _
    // Predicated region
    $region42: #{tpu_custom_call.1} parent=1 // pred_check
      _
    $region43: #{tpu_custom_call.1} parent=1 // pred_check_branch
      %51 = sbr.rel (0) target = $region45
    $region44: #{tpu_custom_call.1} parent=1 // pred_region
      _
    $region45: #{tpu_custom_call.1} parent=1 // pred_fallthru
      _
    // Predicated region
    $region46: #{tpu_custom_call.1} parent=1 // pred_check
      _
    $region47: #{tpu_custom_call.1} parent=1 // pred_check_branch
      %53 = sbr.rel (0) target = $region49
    $region48: #{tpu_custom_call.1} parent=1 // pred_region
      _
    $region49: #{tpu_custom_call.1} parent=1 // pred_fallthru
      _
    // Predicated region
    $region50: #{tpu_custom_call.1} parent=1 // pred_check
      _
    $region51: #{tpu_custom_call.1} parent=1 // pred_check_branch
      %55 = sbr.rel (0) target = $region53
    $region52: #{tpu_custom_call.1} parent=1 // pred_region
      _
    $region53: #{tpu_custom_call.1} parent=1 // pred_fallthru
      _
    // Predicated region
    $region54: #{tpu_custom_call.1} parent=1 // pred_check
      _
    $region55: #{tpu_custom_call.1} parent=1 // pred_check_branch
      %57 = sbr.rel (0) target = $region57
    $region56: #{tpu_custom_call.1} parent=1 // pred_region
      _
    $region57: #{tpu_custom_call.1} parent=1 // pred_fallthru
      _
    // Predicated region
    $region58: #{tpu_custom_call.1} parent=1 // pred_check
      _
    $region59: #{tpu_custom_call.1} parent=1 // pred_check_branch
      %59 = sbr.rel (0) target = $region61
    $region60: #{tpu_custom_call.1} parent=1 // pred_region
      _
    $region61: #{tpu_custom_call.1} parent=1 // pred_fallthru
      _
    // Predicated region
    $region62: #{tpu_custom_call.1} parent=1 // pred_check
      _
    $region63: #{tpu_custom_call.1} parent=1 // pred_check_branch
      %61 = sbr.rel (0) target = $region65
    $region64: #{tpu_custom_call.1} parent=1 // pred_region
      _
    $region65: #{tpu_custom_call.1} parent=1 // pred_fallthru
      _
    // Predicated region
    $region66: #{tpu_custom_call.1} parent=1 // pred_check
      _
    $region67: #{tpu_custom_call.1} parent=1 // pred_check_branch
      %63 = sbr.rel (0) target = $region69
    $region68: #{tpu_custom_call.1} parent=1 // pred_region
      _
    $region69: #{tpu_custom_call.1} parent=1 // pred_fallthru
      _
    %v65 = vld [vmem:[%s0] sm:$0xff]
    %v66 = vld [vmem:[%s0 + $0x8] sm:$0xff]
    %v67 = vpack.c.bf16 %v66, %v65
    %v68 = vld [vmem:[%s1] sm:$0xf]
    %v69 = vld [vmem:[%s1 + $0x4] sm:$0xf]
    %v70 = vld [vmem:[%s1 + $0x8] sm:$0xf]
    %v71 = vld [vmem:[%s1 + $0xc] sm:$0xf]
    %v72 = vld [vmem:[%s2] sm:$0x1]
    %v74 = vlaneseq
    %v75 = vshrl.u32 %v74, 7
    %v76 = vsub.s32 0, %v75
    %v77 = vrot.slane %v72, %v76
    %v83 = vunpack.c.l.b16 %v68
    %v84 = vunpack.c.l.b16 %v69
    %v85 = vunpack.c.l.b16 %v70
    %v86 = vunpack.c.l.b16 %v71
    %v87 = vpack.c.b16 %v84, %v83
    %v88 = vpack.c.b16 %v86, %v85
    %vm91 = vcmask 261120
    %v93 = vsel %vm91, %v67, 0
    %95 = vmatprep.subr.bf16.mxu0 0
    %96 = vmatpush1.bf16.msra.mxu0 %v87
    %97 = vmatprep.subr.bf16.mxu0 0
    %98 = vmatpush1.bf16.msra.mxu0 %v88
    %99 = vmatprep.subr.bf16.mxu0 0
    %100 = vmatpush1.bf16.msra.mxu0 0
    %101 = vmatprep.subr.bf16.mxu0 0
    %102 = vmatpush1.bf16.msra.mxu0 0
    %103 = vmatprep.subr.bf16.mxu0 0
    %104 = vmatpush1.bf16.msra.mxu0 0
    %105 = vmatprep.subr.bf16.mxu0 0
    %106 = vmatpush1.bf16.msra.mxu0 0
    %107 = vmatprep.subr.bf16.mxu0 0
    %108 = vmatpush1.bf16.msra.mxu0 0
    %109 = vmatprep.subr.bf16.mxu0 0
    %110 = vmatpush1.bf16.msra.mxu0 0
    %111 = vmatprep.subr.bf16.mxu0 0
    %112 = vmatpush1.bf16.msra.mxu0 0
    %113 = vmatprep.subr.bf16.mxu0 0
    %114 = vmatpush1.bf16.msra.mxu0 0
    %115 = vmatprep.subr.bf16.mxu0 0
    %116 = vmatpush1.bf16.msra.mxu0 0
    %117 = vmatprep.subr.bf16.mxu0 0
    %118 = vmatpush1.bf16.msra.mxu0 0
    %119 = vmatprep.subr.bf16.mxu0 0
    %120 = vmatpush1.bf16.msra.mxu0 0
    %121 = vmatprep.subr.bf16.mxu0 0
    %122 = vmatpush1.bf16.msra.mxu0 0
    %123 = vmatprep.subr.bf16.mxu0 0
    %124 = vmatpush1.bf16.msra.mxu0 0
    %125 = vmatprep.subr.bf16.mxu0 0
    %126 = vmatpush1.bf16.msra.mxu0 0
    %127 = vmatprep.mubr.bf16.mxu0 0
    %128 = vmatmul.mubr.bf16.gmra.mrb[0].mxu0 %v93
    %v129 = vpop.f32.mrb[0].mxu0
    %v130 = vadd.f32 %v77, %v129
    %v131 = vpop.f32.mrb[0].mxu0
    %v132 = vpop.f32.mrb[0].mxu0
    %v133 = vadd.f32 %v77, %v132
    %v134 = vpop.f32.mrb[0].mxu0
    %135 = vdwg.mxu0
    %v136 = vld [vmem:[%s3] sm:$0x1]
    %v137 = vld [vmem:[%s4] sm:$0x1]
    %vm138 = vcmask 523264
    %v139 = vsel %vm138, %v130, 0.0
    %140 = vadd.xlane.f32.xlu0 %v139
    %v141 = vpop.xlane.xlu0 %140
    %v142 = vsel %vm138, %v133, 0.0
    %143 = vadd.xlane.f32.xlu0 %v142
    %v144 = vpop.xlane.xlu0 %143
    %v145 = vrcp.pop 64.0
    %v146 = vmul.f32 %v141, %v145
    %v147 = vmul.f32 %v144, %v145
    %v148 = vsub.f32 %v130, %v146
    %v149 = vsub.f32 %v133, %v147
    %v150 = vmul.f32 %v148, %v148
    %v151 = vmul.f32 %v149, %v149
    %v152 = vsel %vm138, %v150, 0.0
    %153 = vadd.xlane.f32.xlu0 %v152
    %v154 = vpop.xlane.xlu0 %153
    %v155 = vsel %vm138, %v151, 0.0
    %156 = vadd.xlane.f32.xlu0 %v155
    %v157 = vpop.xlane.xlu0 %156
    %v158 = vmul.f32 %v154, %v145
    %v159 = vmul.f32 %v157, %v145
    %v160 = vadd.f32 %v158, 1e-05
    %v161 = vadd.f32 %v159, 1e-05
    %v162 = vrsqrt.pop %v160
    %v163 = vrsqrt.pop %v161
    %v164 = vmul.f32 %v148, %v162
    %v165 = vmul.f32 %v149, %v163
    %v167 = vlaneseq
    %v168 = vshrl.u32 %v167, 7
    %v169 = vsub.s32 0, %v168
    %v170 = vrot.slane %v136, %v169
    %v172 = vmul.f32 %v164, %v170
    %v173 = vmul.f32 %v165, %v170
    %v175 = vlaneseq
    %v176 = vshrl.u32 %v175, 7
    %v177 = vsub.s32 0, %v176
    %v178 = vrot.slane %v137, %v177
    %v180 = vadd.f32 %v172, %v178
    %v181 = vadd.f32 %v173, %v178
    %v182 = vmax.f32 %v180, 0.0
    %v183 = vmax.f32 %v181, 0.0
    %v184 = vpack.c.bf16 %v183, %v182
    %v185 = vld [vmem:[%s5] sm:$0xf]
    %v186 = vld [vmem:[%s5 + $0x4] sm:$0xf]
    %v187 = vld [vmem:[%s5 + $0x8] sm:$0xf]
    %v188 = vld [vmem:[%s5 + $0xc] sm:$0xf]
    %v189 = vld [vmem:[%s5 + $0x10] sm:$0xf]
    %v190 = vld [vmem:[%s5 + $0x14] sm:$0xf]
    %v191 = vld [vmem:[%s5 + $0x18] sm:$0xf]
    %v192 = vld [vmem:[%s5 + $0x1c] sm:$0xf]
    %v193 = vld [vmem:[%s6] sm:$0x1]
    %v195 = vlaneseq
    %v196 = vshrl.u32 %v195, 7
    %v197 = vsub.s32 0, %v196
    %v198 = vrot.slane %v193, %v197
    %v208 = vunpack.c.l.b16 %v185
    %v209 = vunpack.c.l.b16 %v186
    %v210 = vunpack.c.l.b16 %v187
    %v211 = vunpack.c.l.b16 %v188
    %v212 = vunpack.c.l.b16 %v189
    %v213 = vunpack.c.l.b16 %v190
    %v214 = vunpack.c.l.b16 %v191
    %v215 = vunpack.c.l.b16 %v192
    %v216 = vpack.c.b16 %v209, %v208
    %v217 = vpack.c.b16 %v211, %v210
    %v218 = vpack.c.b16 %v213, %v212
    %v219 = vpack.c.b16 %v215, %v214
    %v225 = vsel %vm138, %v184, 0
    %227 = vmatprep.subr.bf16.mxu0 0
    %228 = vmatpush1.bf16.msra.mxu0 %v216
    %229 = vmatprep.subr.bf16.mxu0 0
    %230 = vmatpush1.bf16.msra.mxu0 %v217
    %231 = vmatprep.subr.bf16.mxu0 0
    %232 = vmatpush1.bf16.msra.mxu0 %v218
    %233 = vmatprep.subr.bf16.mxu0 0
    %234 = vmatpush1.bf16.msra.mxu0 %v219
    %235 = vmatprep.subr.bf16.mxu0 0
    %236 = vmatpush1.bf16.msra.mxu0 0
    %237 = vmatprep.subr.bf16.mxu0 0
    %238 = vmatpush1.bf16.msra.mxu0 0
    %239 = vmatprep.subr.bf16.mxu0 0
    %240 = vmatpush1.bf16.msra.mxu0 0
    %241 = vmatprep.subr.bf16.mxu0 0
    %242 = vmatpush1.bf16.msra.mxu0 0
    %243 = vmatprep.subr.bf16.mxu0 0
    %244 = vmatpush1.bf16.msra.mxu0 0
    %245 = vmatprep.subr.bf16.mxu0 0
    %246 = vmatpush1.bf16.msra.mxu0 0
    %247 = vmatprep.subr.bf16.mxu0 0
    %248 = vmatpush1.bf16.msra.mxu0 0
    %249 = vmatprep.subr.bf16.mxu0 0
    %250 = vmatpush1.bf16.msra.mxu0 0
    %251 = vmatprep.subr.bf16.mxu0 0
    %252 = vmatpush1.bf16.msra.mxu0 0
    %253 = vmatprep.subr.bf16.mxu0 0
    %254 = vmatpush1.bf16.msra.mxu0 0
    %255 = vmatprep.subr.bf16.mxu0 0
    %256 = vmatpush1.bf16.msra.mxu0 0
    %257 = vmatprep.subr.bf16.mxu0 0
    %258 = vmatpush1.bf16.msra.mxu0 0
    %259 = vmatprep.mubr.bf16.mxu0 0
    %260 = vmatmul.mubr.bf16.gmra.mrb[0].mxu0 %v225
    %v261 = vpop.f32.mrb[0].mxu0
    %v262 = vadd.f32 %v198, %v261
    %v263 = vpop.f32.mrb[0].mxu0
    %v264 = vpop.f32.mrb[0].mxu0
    %v265 = vadd.f32 %v198, %v264
    %v266 = vpop.f32.mrb[0].mxu0
    %267 = vdwg.mxu0
    %268 = vst.msk [vmem:[#allocation3] sm:$0xff] %vm91, %v262
    %269 = vst.msk [vmem:[#allocation3 + $0x8] sm:$0xff] %vm91, %v265
    %v270 = vld [vmem:[%s7] sm:$0xf]
    %v271 = vld [vmem:[%s7 + $0x4] sm:$0xf]
    %v272 = vld [vmem:[%s7 + $0x8] sm:$0xf]
    %v273 = vld [vmem:[%s7 + $0xc] sm:$0xf]
    %v274 = vld [vmem:[%s8] sm:$0x1]
    %v276 = vlaneseq
    %v277 = vshrl.u32 %v276, 7
    %v278 = vsub.s32 0, %v277
    %v279 = vrot.slane %v274, %v278
    %v285 = vunpack.c.l.b16 %v270
    %v286 = vunpack.c.l.b16 %v271
    %v287 = vunpack.c.l.b16 %v272
    %v288 = vunpack.c.l.b16 %v273
    %v289 = vpack.c.b16 %v286, %v285
    %v290 = vpack.c.b16 %v288, %v287
    %293 = vmatprep.subr.bf16.mxu0 0
    %294 = vmatpush1.bf16.msra.mxu0 %v289
    %295 = vmatprep.subr.bf16.mxu0 0
    %296 = vmatpush1.bf16.msra.mxu0 %v290
    %297 = vmatprep.subr.bf16.mxu0 0
    %298 = vmatpush1.bf16.msra.mxu0 0
    %299 = vmatprep.subr.bf16.mxu0 0
    %300 = vmatpush1.bf16.msra.mxu0 0
    %301 = vmatprep.subr.bf16.mxu0 0
    %302 = vmatpush1.bf16.msra.mxu0 0
    %303 = vmatprep.subr.bf16.mxu0 0
    %304 = vmatpush1.bf16.msra.mxu0 0
    %305 = vmatprep.subr.bf16.mxu0 0
    %306 = vmatpush1.bf16.msra.mxu0 0
    %307 = vmatprep.subr.bf16.mxu0 0
    %308 = vmatpush1.bf16.msra.mxu0 0
    %309 = vmatprep.subr.bf16.mxu0 0
    %310 = vmatpush1.bf16.msra.mxu0 0
    %311 = vmatprep.subr.bf16.mxu0 0
    %312 = vmatpush1.bf16.msra.mxu0 0
    %313 = vmatprep.subr.bf16.mxu0 0
    %314 = vmatpush1.bf16.msra.mxu0 0
    %315 = vmatprep.subr.bf16.mxu0 0
    %316 = vmatpush1.bf16.msra.mxu0 0
    %317 = vmatprep.subr.bf16.mxu0 0
    %318 = vmatpush1.bf16.msra.mxu0 0
    %319 = vmatprep.subr.bf16.mxu0 0
    %320 = vmatpush1.bf16.msra.mxu0 0
    %321 = vmatprep.subr.bf16.mxu0 0
    %322 = vmatpush1.bf16.msra.mxu0 0
    %323 = vmatprep.subr.bf16.mxu0 0
    %324 = vmatpush1.bf16.msra.mxu0 0
    %325 = vmatprep.mubr.bf16.mxu0 0
    %326 = vmatmul.mubr.bf16.gmra.mrb[0].mxu0 %v93
    %v327 = vpop.f32.mrb[0].mxu0
    %v328 = vadd.f32 %v279, %v327
    %v329 = vpop.f32.mrb[0].mxu0
    %v330 = vpop.f32.mrb[0].mxu0
    %v331 = vadd.f32 %v279, %v330
    %v332 = vpop.f32.mrb[0].mxu0
    %333 = vdwg.mxu0
    %v334 = vpack.c.bf16 %v328, %v328
    %v335 = vpack.c.bf16 %v331, %v331
    %337 = vrot.lane.b32.xlu0 %v334, 96
    %v338 = vpop.permute.xlu0 %337
    %vm339 = vcmask 64512
    %v341 = vsel %vm339, %v334, 0
    %v344 = vsel %vm339, %v338, 0
    %346 = vmatprep.subr.bf16.mxu0 0
    %347 = vmatpush1.bf16.xpose.msra.mxu0 %v344
    %348 = vmatprep.subr.bf16.mxu0 0
    %349 = vmatpush1.bf16.xpose.msra.mxu0 0
    %350 = vmatprep.subr.bf16.mxu0 0
    %351 = vmatpush1.bf16.xpose.msra.mxu0 0
    %352 = vmatprep.subr.bf16.mxu0 0
    %353 = vmatpush1.bf16.xpose.msra.mxu0 0
    %354 = vmatprep.subr.bf16.mxu0 0
    %355 = vmatpush1.bf16.xpose.msra.mxu0 0
    %356 = vmatprep.subr.bf16.mxu0 0
    %357 = vmatpush1.bf16.xpose.msra.mxu0 0
    %358 = vmatprep.subr.bf16.mxu0 0
    %359 = vmatpush1.bf16.xpose.msra.mxu0 0
    %360 = vmatprep.subr.bf16.mxu0 0
    %361 = vmatpush1.bf16.xpose.msra.mxu0 0
    %362 = vmatprep.subr.bf16.mxu0 0
    %363 = vmatpush1.bf16.xpose.msra.mxu0 0
    %364 = vmatprep.subr.bf16.mxu0 0
    %365 = vmatpush1.bf16.xpose.msra.mxu0 0
    %366 = vmatprep.subr.bf16.mxu0 0
    %367 = vmatpush1.bf16.xpose.msra.mxu0 0
    %368 = vmatprep.subr.bf16.mxu0 0
    %369 = vmatpush1.bf16.xpose.msra.mxu0 0
    %370 = vmatprep.subr.bf16.mxu0 0
    %371 = vmatpush1.bf16.xpose.msra.mxu0 0
    %372 = vmatprep.subr.bf16.mxu0 0
    %373 = vmatpush1.bf16.xpose.msra.mxu0 0
    %374 = vmatprep.subr.bf16.mxu0 0
    %375 = vmatpush1.bf16.xpose.msra.mxu0 0
    %376 = vmatprep.subr.bf16.mxu0 0
    %377 = vmatpush1.bf16.xpose.msra.mxu0 0
    %378 = vmatprep.mubr.bf16.mxu0 0
    %379 = vmatmul.mubr.bf16.gmra.mrb[0].mxu0 %v341
    %v380 = vpop.f32.mrb[0].mxu0
    %v381 = vadd.f32 0.0, %v380
    %v382 = vpop.f32.mrb[0].mxu0
    %v383 = vpop.f32.mrb[0].mxu0
    %v384 = vpop.f32.mrb[0].mxu0
    %385 = vdwg.mxu0
    %387 = vrot.lane.b32.xlu0 %v335, 96
    %v388 = vpop.permute.xlu0 %387
    %v390 = vsel %vm339, %v335, 0
    %v393 = vsel %vm339, %v388, 0
    %395 = vmatprep.subr.bf16.mxu0 0
    %396 = vmatpush1.bf16.xpose.msra.mxu0 %v393
    %397 = vmatprep.subr.bf16.mxu0 0
    %398 = vmatpush1.bf16.xpose.msra.mxu0 0
    %399 = vmatprep.subr.bf16.mxu0 0
    %400 = vmatpush1.bf16.xpose.msra.mxu0 0
    %401 = vmatprep.subr.bf16.mxu0 0
    %402 = vmatpush1.bf16.xpose.msra.mxu0 0
    %403 = vmatprep.subr.bf16.mxu0 0
    %404 = vmatpush1.bf16.xpose.msra.mxu0 0
    %405 = vmatprep.subr.bf16.mxu0 0
    %406 = vmatpush1.bf16.xpose.msra.mxu0 0
    %407 = vmatprep.subr.bf16.mxu0 0
    %408 = vmatpush1.bf16.xpose.msra.mxu0 0
    %409 = vmatprep.subr.bf16.mxu0 0
    %410 = vmatpush1.bf16.xpose.msra.mxu0 0
    %411 = vmatprep.subr.bf16.mxu0 0
    %412 = vmatpush1.bf16.xpose.msra.mxu0 0
    %413 = vmatprep.subr.bf16.mxu0 0
    %414 = vmatpush1.bf16.xpose.msra.mxu0 0
    %415 = vmatprep.subr.bf16.mxu0 0
    %416 = vmatpush1.bf16.xpose.msra.mxu0 0
    %417 = vmatprep.subr.bf16.mxu0 0
    %418 = vmatpush1.bf16.xpose.msra.mxu0 0
    %419 = vmatprep.subr.bf16.mxu0 0
    %420 = vmatpush1.bf16.xpose.msra.mxu0 0
    %421 = vmatprep.subr.bf16.mxu0 0
    %422 = vmatpush1.bf16.xpose.msra.mxu0 0
    %423 = vmatprep.subr.bf16.mxu0 0
    %424 = vmatpush1.bf16.xpose.msra.mxu0 0
    %425 = vmatprep.subr.bf16.mxu0 0
    %426 = vmatpush1.bf16.xpose.msra.mxu0 0
    %427 = vmatprep.mubr.bf16.mxu0 0
    %428 = vmatmul.mubr.bf16.gmra.mrb[0].mxu0 %v390
    %v429 = vpop.f32.mrb[0].mxu0
    %v430 = vadd.f32 0.0, %v429
    %v431 = vpop.f32.mrb[0].mxu0
    %v432 = vpop.f32.mrb[0].mxu0
    %v433 = vpop.f32.mrb[0].mxu0
    %434 = vdwg.mxu0
    %v435 = vsel %vm339, %v381, -inf
    %436 = vmax.xlane.f32.xlu0 %v435
    %v437 = vpop.xlane.xlu0 %436
    %v438 = vsel %vm339, %v430, -inf
    %439 = vmax.xlane.f32.xlu0 %v438
    %v440 = vpop.xlane.xlu0 %439
    %v441 = vsub.f32 %v381, %v437
    %v442 = vsub.f32 %v430, %v440
    %v443 = vmul.f32 %v441, 1.442695
    %v444 = vpow.pop %v443
    %v445 = vmul.f32 %v442, 1.442695
    %v446 = vpow.pop %v445
    %v447 = vsel %vm339, %v444, 0.0
    %448 = vadd.xlane.f32.xlu0 %v447
    %v449 = vpop.xlane.xlu0 %448
    %v450 = vsel %vm339, %v446, 0.0
    %451 = vadd.xlane.f32.xlu0 %v450
    %v452 = vpop.xlane.xlu0 %451
    %v453 = vrcp.pop %v449
    %v454 = vrcp.pop %v452
    %v455 = vmul.f32 %v444, %v453
    %v456 = vmul.f32 %v446, %v454
    %v457 = vadd.f32 %v455, 0.0
    %v458 = vadd.f32 %v456, 0.0
    %v459 = vpack.c.bf16 %v455, %v455
    %v460 = vpack.c.bf16 %v456, %v456
    %461 = vrot.lane.b32.xlu0 %v334, 64
    %v462 = vpop.permute.xlu0 %461
    %v464 = vsel %vm339, %v459, 0
    %vm466 = vcmask 1043456
    %v468 = vsel %vm466, %v462, 0
    %470 = vmatprep.subr.bf16.mxu0 0
    %471 = vmatpush1.bf16.msra.mxu0 %v468
    %472 = vmatprep.subr.bf16.mxu0 0
    %473 = vmatpush1.bf16.msra.mxu0 0
    %474 = vmatprep.subr.bf16.mxu0 0
    %475 = vmatpush1.bf16.msra.mxu0 0
    %476 = vmatprep.subr.bf16.mxu0 0
    %477 = vmatpush1.bf16.msra.mxu0 0
    %478 = vmatprep.subr.bf16.mxu0 0
    %479 = vmatpush1.bf16.msra.mxu0 0
    %480 = vmatprep.subr.bf16.mxu0 0
    %481 = vmatpush1.bf16.msra.mxu0 0
    %482 = vmatprep.subr.bf16.mxu0 0
    %483 = vmatpush1.bf16.msra.mxu0 0
    %484 = vmatprep.subr.bf16.mxu0 0
    %485 = vmatpush1.bf16.msra.mxu0 0
    %486 = vmatprep.subr.bf16.mxu0 0
    %487 = vmatpush1.bf16.msra.mxu0 0
    %488 = vmatprep.subr.bf16.mxu0 0
    %489 = vmatpush1.bf16.msra.mxu0 0
    %490 = vmatprep.subr.bf16.mxu0 0
    %491 = vmatpush1.bf16.msra.mxu0 0
    %492 = vmatprep.subr.bf16.mxu0 0
    %493 = vmatpush1.bf16.msra.mxu0 0
    %494 = vmatprep.subr.bf16.mxu0 0
    %495 = vmatpush1.bf16.msra.mxu0 0
    %496 = vmatprep.subr.bf16.mxu0 0
    %497 = vmatpush1.bf16.msra.mxu0 0
    %498 = vmatprep.subr.bf16.mxu0 0
    %499 = vmatpush1.bf16.msra.mxu0 0
    %500 = vmatprep.subr.bf16.mxu0 0
    %501 = vmatpush1.bf16.msra.mxu0 0
    %502 = vmatprep.mubr.bf16.mxu0 0
    %503 = vmatmul.mubr.bf16.gmra.mrb[0].mxu0 %v464
    %v504 = vpop.f32.mrb[0].mxu0
    %v505 = vadd.f32 0.0, %v504
    %v506 = vpop.f32.mrb[0].mxu0
    %v507 = vpop.f32.mrb[0].mxu0
    %v508 = vpop.f32.mrb[0].mxu0
    %509 = vdwg.mxu0
    %510 = vrot.lane.b32.xlu0 %v335, 64
    %v511 = vpop.permute.xlu0 %510
    %v513 = vsel %vm339, %v460, 0
    %v516 = vsel %vm466, %v511, 0
    %518 = vmatprep.subr.bf16.mxu0 0
    %519 = vmatpush1.bf16.msra.mxu0 %v516
    %520 = vmatprep.subr.bf16.mxu0 0
    %521 = vmatpush1.bf16.msra.mxu0 0
    %522 = vmatprep.subr.bf16.mxu0 0
    %523 = vmatpush1.bf16.msra.mxu0 0
    %524 = vmatprep.subr.bf16.mxu0 0
    %525 = vmatpush1.bf16.msra.mxu0 0
    %526 = vmatprep.subr.bf16.mxu0 0
    %527 = vmatpush1.bf16.msra.mxu0 0
    %528 = vmatprep.subr.bf16.mxu0 0
    %529 = vmatpush1.bf16.msra.mxu0 0
    %530 = vmatprep.subr.bf16.mxu0 0
    %531 = vmatpush1.bf16.msra.mxu0 0
    %532 = vmatprep.subr.bf16.mxu0 0
    %533 = vmatpush1.bf16.msra.mxu0 0
    %534 = vmatprep.subr.bf16.mxu0 0
    %535 = vmatpush1.bf16.msra.mxu0 0
    %536 = vmatprep.subr.bf16.mxu0 0
    %537 = vmatpush1.bf16.msra.mxu0 0
    %538 = vmatprep.subr.bf16.mxu0 0
    %539 = vmatpush1.bf16.msra.mxu0 0
    %540 = vmatprep.subr.bf16.mxu0 0
    %541 = vmatpush1.bf16.msra.mxu0 0
    %542 = vmatprep.subr.bf16.mxu0 0
    %543 = vmatpush1.bf16.msra.mxu0 0
    %544 = vmatprep.subr.bf16.mxu0 0
    %545 = vmatpush1.bf16.msra.mxu0 0
    %546 = vmatprep.subr.bf16.mxu0 0
    %547 = vmatpush1.bf16.msra.mxu0 0
    %548 = vmatprep.subr.bf16.mxu0 0
    %549 = vmatpush1.bf16.msra.mxu0 0
    %550 = vmatprep.mubr.bf16.mxu0 0
    %551 = vmatmul.mubr.bf16.gmra.mrb[0].mxu0 %v513
    %v552 = vpop.f32.mrb[0].mxu0
    %v553 = vadd.f32 0.0, %v552
    %v554 = vpop.f32.mrb[0].mxu0
    %v555 = vpop.f32.mrb[0].mxu0
    %v556 = vpop.f32.mrb[0].mxu0
    %557 = vdwg.mxu0
    %558 = vrot.lane.b32.xlu0 %v334, 120
    %v559 = vpop.permute.xlu0 %558
    %560 = vrot.lane.b32.xlu0 %v334, 88
    %v561 = vpop.permute.xlu0 %560
    %v563 = vsel %vm339, %v559, 0
    %v566 = vsel %vm339, %v561, 0
    %568 = vmatprep.subr.bf16.mxu0 0
    %569 = vmatpush1.bf16.xpose.msra.mxu0 %v566
    %570 = vmatprep.subr.bf16.mxu0 0
    %571 = vmatpush1.bf16.xpose.msra.mxu0 0
    %572 = vmatprep.subr.bf16.mxu0 0
    %573 = vmatpush1.bf16.xpose.msra.mxu0 0
    %574 = vmatprep.subr.bf16.mxu0 0
    %575 = vmatpush1.bf16.xpose.msra.mxu0 0
    %576 = vmatprep.subr.bf16.mxu0 0
    %577 = vmatpush1.bf16.xpose.msra.mxu0 0
    %578 = vmatprep.subr.bf16.mxu0 0
    %579 = vmatpush1.bf16.xpose.msra.mxu0 0
    %580 = vmatprep.subr.bf16.mxu0 0
    %581 = vmatpush1.bf16.xpose.msra.mxu0 0
    %582 = vmatprep.subr.bf16.mxu0 0
    %583 = vmatpush1.bf16.xpose.msra.mxu0 0
    %584 = vmatprep.subr.bf16.mxu0 0
    %585 = vmatpush1.bf16.xpose.msra.mxu0 0
    %586 = vmatprep.subr.bf16.mxu0 0
    %587 = vmatpush1.bf16.xpose.msra.mxu0 0
    %588 = vmatprep.subr.bf16.mxu0 0
    %589 = vmatpush1.bf16.xpose.msra.mxu0 0
    %590 = vmatprep.subr.bf16.mxu0 0
    %591 = vmatpush1.bf16.xpose.msra.mxu0 0
    %592 = vmatprep.subr.bf16.mxu0 0
    %593 = vmatpush1.bf16.xpose.msra.mxu0 0
    %594 = vmatprep.subr.bf16.mxu0 0
    %595 = vmatpush1.bf16.xpose.msra.mxu0 0
    %596 = vmatprep.subr.bf16.mxu0 0
    %597 = vmatpush1.bf16.xpose.msra.mxu0 0
    %598 = vmatprep.subr.bf16.mxu0 0
    %599 = vmatpush1.bf16.xpose.msra.mxu0 0
    %600 = vmatprep.mubr.bf16.mxu0 0
    %601 = vmatmul.mubr.bf16.gmra.mrb[0].mxu0 %v563
    %v602 = vpop.f32.mrb[0].mxu0
    %v603 = vadd.f32 0.0, %v602
    %v604 = vpop.f32.mrb[0].mxu0
    %v605 = vpop.f32.mrb[0].mxu0
    %v606 = vpop.f32.mrb[0].mxu0
    %607 = vdwg.mxu0
    %608 = vrot.lane.b32.xlu0 %v335, 120
    %v609 = vpop.permute.xlu0 %608
    %610 = vrot.lane.b32.xlu0 %v335, 88
    %v611 = vpop.permute.xlu0 %610
    %v613 = vsel %vm339, %v609, 0
    %v616 = vsel %vm339, %v611, 0
    %618 = vmatprep.subr.bf16.mxu0 0
    %619 = vmatpush1.bf16.xpose.msra.mxu0 %v616
    %620 = vmatprep.subr.bf16.mxu0 0
    %621 = vmatpush1.bf16.xpose.msra.mxu0 0
    %622 = vmatprep.subr.bf16.mxu0 0
    %623 = vmatpush1.bf16.xpose.msra.mxu0 0
    %624 = vmatprep.subr.bf16.mxu0 0
    %625 = vmatpush1.bf16.xpose.msra.mxu0 0
    %626 = vmatprep.subr.bf16.mxu0 0
    %627 = vmatpush1.bf16.xpose.msra.mxu0 0
    %628 = vmatprep.subr.bf16.mxu0 0
    %629 = vmatpush1.bf16.xpose.msra.mxu0 0
    %630 = vmatprep.subr.bf16.mxu0 0
    %631 = vmatpush1.bf16.xpose.msra.mxu0 0
    %632 = vmatprep.subr.bf16.mxu0 0
    %633 = vmatpush1.bf16.xpose.msra.mxu0 0
    %634 = vmatprep.subr.bf16.mxu0 0
    %635 = vmatpush1.bf16.xpose.msra.mxu0 0
    %636 = vmatprep.subr.bf16.mxu0 0
    %637 = vmatpush1.bf16.xpose.msra.mxu0 0
    %638 = vmatprep.subr.bf16.mxu0 0
    %639 = vmatpush1.bf16.xpose.msra.mxu0 0
    %640 = vmatprep.subr.bf16.mxu0 0
    %641 = vmatpush1.bf16.xpose.msra.mxu0 0
    %642 = vmatprep.subr.bf16.mxu0 0
    %643 = vmatpush1.bf16.xpose.msra.mxu0 0
    %644 = vmatprep.subr.bf16.mxu0 0
    %645 = vmatpush1.bf16.xpose.msra.mxu0 0
    %646 = vmatprep.subr.bf16.mxu0 0
    %647 = vmatpush1.bf16.xpose.msra.mxu0 0
    %648 = vmatprep.subr.bf16.mxu0 0
    %649 = vmatpush1.bf16.xpose.msra.mxu0 0
    %650 = vmatprep.mubr.bf16.mxu0 0
    %651 = vmatmul.mubr.bf16.gmra.mrb[0].mxu0 %v613
    %v652 = vpop.f32.mrb[0].mxu0
    %v653 = vadd.f32 0.0, %v652
    %v654 = vpop.f32.mrb[0].mxu0
    %v655 = vpop.f32.mrb[0].mxu0
    %v656 = vpop.f32.mrb[0].mxu0
    %657 = vdwg.mxu0
    %v658 = vsel %vm339, %v603, -inf
    %659 = vmax.xlane.f32.xlu0 %v658
    %v660 = vpop.xlane.xlu0 %659
    %v661 = vsel %vm339, %v653, -inf
    %662 = vmax.xlane.f32.xlu0 %v661
    %v663 = vpop.xlane.xlu0 %662
    %v664 = vsub.f32 %v603, %v660
    %v665 = vsub.f32 %v653, %v663
    %v666 = vmul.f32 %v664, 1.442695
    %v667 = vpow.pop %v666
    %v668 = vmul.f32 %v665, 1.442695
    %v669 = vpow.pop %v668
    %v670 = vsel %vm339, %v667, 0.0
    %671 = vadd.xlane.f32.xlu0 %v670
    %v672 = vpop.xlane.xlu0 %671
    %v673 = vsel %vm339, %v669, 0.0
    %674 = vadd.xlane.f32.xlu0 %v673
    %v675 = vpop.xlane.xlu0 %674
    %v676 = vrcp.pop %v672
    %v677 = vrcp.pop %v675
    %v678 = vmul.f32 %v667, %v676
    %v679 = vmul.f32 %v669, %v677
    %v680 = vadd.f32 %v457, %v678
    %v681 = vadd.f32 %v458, %v679
    %v682 = vpack.c.bf16 %v678, %v678
    %v683 = vpack.c.bf16 %v679, %v679
    %684 = vrot.lane.b32.xlu0 %v334, 56
    %v685 = vpop.permute.xlu0 %684
    %v687 = vsel %vm339, %v682, 0
    %v690 = vsel %vm466, %v685, 0
    %692 = vmatprep.subr.bf16.mxu0 0
    %693 = vmatpush1.bf16.msra.mxu0 %v690
    %694 = vmatprep.subr.bf16.mxu0 0
    %695 = vmatpush1.bf16.msra.mxu0 0
    %696 = vmatprep.subr.bf16.mxu0 0
    %697 = vmatpush1.bf16.msra.mxu0 0
    %698 = vmatprep.subr.bf16.mxu0 0
    %699 = vmatpush1.bf16.msra.mxu0 0
    %700 = vmatprep.subr.bf16.mxu0 0
    %701 = vmatpush1.bf16.msra.mxu0 0
    %702 = vmatprep.subr.bf16.mxu0 0
    %703 = vmatpush1.bf16.msra.mxu0 0
    %704 = vmatprep.subr.bf16.mxu0 0
    %705 = vmatpush1.bf16.msra.mxu0 0
    %706 = vmatprep.subr.bf16.mxu0 0
    %707 = vmatpush1.bf16.msra.mxu0 0
    %708 = vmatprep.subr.bf16.mxu0 0
    %709 = vmatpush1.bf16.msra.mxu0 0
    %710 = vmatprep.subr.bf16.mxu0 0
    %711 = vmatpush1.bf16.msra.mxu0 0
    %712 = vmatprep.subr.bf16.mxu0 0
    %713 = vmatpush1.bf16.msra.mxu0 0
    %714 = vmatprep.subr.bf16.mxu0 0
    %715 = vmatpush1.bf16.msra.mxu0 0
    %716 = vmatprep.subr.bf16.mxu0 0
    %717 = vmatpush1.bf16.msra.mxu0 0
    %718 = vmatprep.subr.bf16.mxu0 0
    %719 = vmatpush1.bf16.msra.mxu0 0
    %720 = vmatprep.subr.bf16.mxu0 0
    %721 = vmatpush1.bf16.msra.mxu0 0
    %722 = vmatprep.subr.bf16.mxu0 0
    %723 = vmatpush1.bf16.msra.mxu0 0
    %724 = vmatprep.mubr.bf16.mxu0 0
    %725 = vmatmul.mubr.bf16.gmra.mrb[0].mxu0 %v687
    %v726 = vpop.f32.mrb[0].mxu0
    %v727 = vadd.f32 0.0, %v726
    %v728 = vpop.f32.mrb[0].mxu0
    %v729 = vpop.f32.mrb[0].mxu0
    %v730 = vpop.f32.mrb[0].mxu0
    %731 = vdwg.mxu0
    %732 = vrot.lane.b32.xlu0 %v335, 56
    %v733 = vpop.permute.xlu0 %732
    %v735 = vsel %vm339, %v683, 0
    %v738 = vsel %vm466, %v733, 0
    %740 = vmatprep.subr.bf16.mxu0 0
    %741 = vmatpush1.bf16.msra.mxu0 %v738
    %742 = vmatprep.subr.bf16.mxu0 0
    %743 = vmatpush1.bf16.msra.mxu0 0
    %744 = vmatprep.subr.bf16.mxu0 0
    %745 = vmatpush1.bf16.msra.mxu0 0
    %746 = vmatprep.subr.bf16.mxu0 0
    %747 = vmatpush1.bf16.msra.mxu0 0
    %748 = vmatprep.subr.bf16.mxu0 0
    %749 = vmatpush1.bf16.msra.mxu0 0
    %750 = vmatprep.subr.bf16.mxu0 0
    %751 = vmatpush1.bf16.msra.mxu0 0
    %752 = vmatprep.subr.bf16.mxu0 0
    %753 = vmatpush1.bf16.msra.mxu0 0
    %754 = vmatprep.subr.bf16.mxu0 0
    %755 = vmatpush1.bf16.msra.mxu0 0
    %756 = vmatprep.subr.bf16.mxu0 0
    %757 = vmatpush1.bf16.msra.mxu0 0
    %758 = vmatprep.subr.bf16.mxu0 0
    %759 = vmatpush1.bf16.msra.mxu0 0
    %760 = vmatprep.subr.bf16.mxu0 0
    %761 = vmatpush1.bf16.msra.mxu0 0
    %762 = vmatprep.subr.bf16.mxu0 0
    %763 = vmatpush1.bf16.msra.mxu0 0
    %764 = vmatprep.subr.bf16.mxu0 0
    %765 = vmatpush1.bf16.msra.mxu0 0
    %766 = vmatprep.subr.bf16.mxu0 0
    %767 = vmatpush1.bf16.msra.mxu0 0
    %768 = vmatprep.subr.bf16.mxu0 0
    %769 = vmatpush1.bf16.msra.mxu0 0
    %770 = vmatprep.subr.bf16.mxu0 0
    %771 = vmatpush1.bf16.msra.mxu0 0
    %772 = vmatprep.mubr.bf16.mxu0 0
    %773 = vmatmul.mubr.bf16.gmra.mrb[0].mxu0 %v735
    %v774 = vpop.f32.mrb[0].mxu0
    %v775 = vadd.f32 0.0, %v774
    %v776 = vpop.f32.mrb[0].mxu0
    %v777 = vpop.f32.mrb[0].mxu0
    %v778 = vpop.f32.mrb[0].mxu0
    %779 = vdwg.mxu0
    %780 = vrot.lane.b32.xlu0 %v334, 112
    %v781 = vpop.permute.xlu0 %780
    %782 = vrot.lane.b32.xlu0 %v334, 80
    %v783 = vpop.permute.xlu0 %782
    %v785 = vsel %vm339, %v781, 0
    %v788 = vsel %vm339, %v783, 0
    %790 = vmatprep.subr.bf16.mxu0 0
    %791 = vmatpush1.bf16.xpose.msra.mxu0 %v788
    %792 = vmatprep.subr.bf16.mxu0 0
    %793 = vmatpush1.bf16.xpose.msra.mxu0 0
    %794 = vmatprep.subr.bf16.mxu0 0
    %795 = vmatpush1.bf16.xpose.msra.mxu0 0
    %796 = vmatprep.subr.bf16.mxu0 0
    %797 = vmatpush1.bf16.xpose.msra.mxu0 0
    %798 = vmatprep.subr.bf16.mxu0 0
    %799 = vmatpush1.bf16.xpose.msra.mxu0 0
    %800 = vmatprep.subr.bf16.mxu0 0
    %801 = vmatpush1.bf16.xpose.msra.mxu0 0
    %802 = vmatprep.subr.bf16.mxu0 0
    %803 = vmatpush1.bf16.xpose.msra.mxu0 0
    %804 = vmatprep.subr.bf16.mxu0 0
    %805 = vmatpush1.bf16.xpose.msra.mxu0 0
    %806 = vmatprep.subr.bf16.mxu0 0
    %807 = vmatpush1.bf16.xpose.msra.mxu0 0
    %808 = vmatprep.subr.bf16.mxu0 0
    %809 = vmatpush1.bf16.xpose.msra.mxu0 0
    %810 = vmatprep.subr.bf16.mxu0 0
    %811 = vmatpush1.bf16.xpose.msra.mxu0 0
    %812 = vmatprep.subr.bf16.mxu0 0
    %813 = vmatpush1.bf16.xpose.msra.mxu0 0
    %814 = vmatprep.subr.bf16.mxu0 0
    %815 = vmatpush1.bf16.xpose.msra.mxu0 0
    %816 = vmatprep.subr.bf16.mxu0 0
    %817 = vmatpush1.bf16.xpose.msra.mxu0 0
    %818 = vmatprep.subr.bf16.mxu0 0
    %819 = vmatpush1.bf16.xpose.msra.mxu0 0
    %820 = vmatprep.subr.bf16.mxu0 0
    %821 = vmatpush1.bf16.xpose.msra.mxu0 0
    %822 = vmatprep.mubr.bf16.mxu0 0
    %823 = vmatmul.mubr.bf16.gmra.mrb[0].mxu0 %v785
    %v824 = vpop.f32.mrb[0].mxu0
    %v825 = vadd.f32 0.0, %v824
    %v826 = vpop.f32.mrb[0].mxu0
    %v827 = vpop.f32.mrb[0].mxu0
    %v828 = vpop.f32.mrb[0].mxu0
    %829 = vdwg.mxu0
    %830 = vrot.lane.b32.xlu0 %v335, 112
    %v831 = vpop.permute.xlu0 %830
    %832 = vrot.lane.b32.xlu0 %v335, 80
    %v833 = vpop.permute.xlu0 %832
    %v835 = vsel %vm339, %v831, 0
    %v838 = vsel %vm339, %v833, 0
    %840 = vmatprep.subr.bf16.mxu0 0
    %841 = vmatpush1.bf16.xpose.msra.mxu0 %v838
    %842 = vmatprep.subr.bf16.mxu0 0
    %843 = vmatpush1.bf16.xpose.msra.mxu0 0
    %844 = vmatprep.subr.bf16.mxu0 0
    %845 = vmatpush1.bf16.xpose.msra.mxu0 0
    %846 = vmatprep.subr.bf16.mxu0 0
    %847 = vmatpush1.bf16.xpose.msra.mxu0 0
    %848 = vmatprep.subr.bf16.mxu0 0
    %849 = vmatpush1.bf16.xpose.msra.mxu0 0
    %850 = vmatprep.subr.bf16.mxu0 0
    %851 = vmatpush1.bf16.xpose.msra.mxu0 0
    %852 = vmatprep.subr.bf16.mxu0 0
    %853 = vmatpush1.bf16.xpose.msra.mxu0 0
    %854 = vmatprep.subr.bf16.mxu0 0
    %855 = vmatpush1.bf16.xpose.msra.mxu0 0
    %856 = vmatprep.subr.bf16.mxu0 0
    %857 = vmatpush1.bf16.xpose.msra.mxu0 0
    %858 = vmatprep.subr.bf16.mxu0 0
    %859 = vmatpush1.bf16.xpose.msra.mxu0 0
    %860 = vmatprep.subr.bf16.mxu0 0
    %861 = vmatpush1.bf16.xpose.msra.mxu0 0
    %862 = vmatprep.subr.bf16.mxu0 0
    %863 = vmatpush1.bf16.xpose.msra.mxu0 0
    %864 = vmatprep.subr.bf16.mxu0 0
    %865 = vmatpush1.bf16.xpose.msra.mxu0 0
    %866 = vmatprep.subr.bf16.mxu0 0
    %867 = vmatpush1.bf16.xpose.msra.mxu0 0
    %868 = vmatprep.subr.bf16.mxu0 0
    %869 = vmatpush1.bf16.xpose.msra.mxu0 0
    %870 = vmatprep.subr.bf16.mxu0 0
    %871 = vmatpush1.bf16.xpose.msra.mxu0 0
    %872 = vmatprep.mubr.bf16.mxu0 0
    %873 = vmatmul.mubr.bf16.gmra.mrb[0].mxu0 %v835
    %v874 = vpop.f32.mrb[0].mxu0
    %v875 = vadd.f32 0.0, %v874
    %v876 = vpop.f32.mrb[0].mxu0
    %v877 = vpop.f32.mrb[0].mxu0
    %v878 = vpop.f32.mrb[0].mxu0
    %879 = vdwg.mxu0
    %v880 = vsel %vm339, %v825, -inf
    %881 = vmax.xlane.f32.xlu0 %v880
    %v882 = vpop.xlane.xlu0 %881
    %v883 = vsel %vm339, %v875, -inf
    %884 = vmax.xlane.f32.xlu0 %v883
    %v885 = vpop.xlane.xlu0 %884
    %v886 = vsub.f32 %v825, %v882
    %v887 = vsub.f32 %v875, %v885
    %v888 = vmul.f32 %v886, 1.442695
    %v889 = vpow.pop %v888
    %v890 = vmul.f32 %v887, 1.442695
    %v891 = vpow.pop %v890
    %v892 = vsel %vm339, %v889, 0.0
    %893 = vadd.xlane.f32.xlu0 %v892
    %v894 = vpop.xlane.xlu0 %893
    %v895 = vsel %vm339, %v891, 0.0
    %896 = vadd.xlane.f32.xlu0 %v895
    %v897 = vpop.xlane.xlu0 %896
    %v898 = vrcp.pop %v894
    %v899 = vrcp.pop %v897
    %v900 = vmul.f32 %v889, %v898
    %v901 = vmul.f32 %v891, %v899
    %v902 = vadd.f32 %v680, %v900
    %v903 = vadd.f32 %v681, %v901
    %v904 = vpack.c.bf16 %v900, %v900
    %v905 = vpack.c.bf16 %v901, %v901
    %906 = vrot.lane.b32.xlu0 %v334, 48
    %v907 = vpop.permute.xlu0 %906
    %v909 = vsel %vm339, %v904, 0
    %v912 = vsel %vm466, %v907, 0
    %914 = vmatprep.subr.bf16.mxu0 0
    %915 = vmatpush1.bf16.msra.mxu0 %v912
    %916 = vmatprep.subr.bf16.mxu0 0
    %917 = vmatpush1.bf16.msra.mxu0 0
    %918 = vmatprep.subr.bf16.mxu0 0
    %919 = vmatpush1.bf16.msra.mxu0 0
    %920 = vmatprep.subr.bf16.mxu0 0
    %921 = vmatpush1.bf16.msra.mxu0 0
    %922 = vmatprep.subr.bf16.mxu0 0
    %923 = vmatpush1.bf16.msra.mxu0 0
    %924 = vmatprep.subr.bf16.mxu0 0
    %925 = vmatpush1.bf16.msra.mxu0 0
    %926 = vmatprep.subr.bf16.mxu0 0
    %927 = vmatpush1.bf16.msra.mxu0 0
    %928 = vmatprep.subr.bf16.mxu0 0
    %929 = vmatpush1.bf16.msra.mxu0 0
    %930 = vmatprep.subr.bf16.mxu0 0
    %931 = vmatpush1.bf16.msra.mxu0 0
    %932 = vmatprep.subr.bf16.mxu0 0
    %933 = vmatpush1.bf16.msra.mxu0 0
    %934 = vmatprep.subr.bf16.mxu0 0
    %935 = vmatpush1.bf16.msra.mxu0 0
    %936 = vmatprep.subr.bf16.mxu0 0
    %937 = vmatpush1.bf16.msra.mxu0 0
    %938 = vmatprep.subr.bf16.mxu0 0
    %939 = vmatpush1.bf16.msra.mxu0 0
    %940 = vmatprep.subr.bf16.mxu0 0
    %941 = vmatpush1.bf16.msra.mxu0 0
    %942 = vmatprep.subr.bf16.mxu0 0
    %943 = vmatpush1.bf16.msra.mxu0 0
    %944 = vmatprep.subr.bf16.mxu0 0
    %945 = vmatpush1.bf16.msra.mxu0 0
    %946 = vmatprep.mubr.bf16.mxu0 0
    %947 = vmatmul.mubr.bf16.gmra.mrb[0].mxu0 %v909
    %v948 = vpop.f32.mrb[0].mxu0
    %v949 = vadd.f32 0.0, %v948
    %v950 = vpop.f32.mrb[0].mxu0
    %v951 = vpop.f32.mrb[0].mxu0
    %v952 = vpop.f32.mrb[0].mxu0
    %953 = vdwg.mxu0
    %954 = vrot.lane.b32.xlu0 %v335, 48
    %v955 = vpop.permute.xlu0 %954
    %v957 = vsel %vm339, %v905, 0
    %v960 = vsel %vm466, %v955, 0
    %962 = vmatprep.subr.bf16.mxu0 0
    %963 = vmatpush1.bf16.msra.mxu0 %v960
    %964 = vmatprep.subr.bf16.mxu0 0
    %965 = vmatpush1.bf16.msra.mxu0 0
    %966 = vmatprep.subr.bf16.mxu0 0
    %967 = vmatpush1.bf16.msra.mxu0 0
    %968 = vmatprep.subr.bf16.mxu0 0
    %969 = vmatpush1.bf16.msra.mxu0 0
    %970 = vmatprep.subr.bf16.mxu0 0
    %971 = vmatpush1.bf16.msra.mxu0 0
    %972 = vmatprep.subr.bf16.mxu0 0
    %973 = vmatpush1.bf16.msra.mxu0 0
    %974 = vmatprep.subr.bf16.mxu0 0
    %975 = vmatpush1.bf16.msra.mxu0 0
    %976 = vmatprep.subr.bf16.mxu0 0
    %977 = vmatpush1.bf16.msra.mxu0 0
    %978 = vmatprep.subr.bf16.mxu0 0
    %979 = vmatpush1.bf16.msra.mxu0 0
    %980 = vmatprep.subr.bf16.mxu0 0
    %981 = vmatpush1.bf16.msra.mxu0 0
    %982 = vmatprep.subr.bf16.mxu0 0
    %983 = vmatpush1.bf16.msra.mxu0 0
    %984 = vmatprep.subr.bf16.mxu0 0
    %985 = vmatpush1.bf16.msra.mxu0 0
    %986 = vmatprep.subr.bf16.mxu0 0
    %987 = vmatpush1.bf16.msra.mxu0 0
    %988 = vmatprep.subr.bf16.mxu0 0
    %989 = vmatpush1.bf16.msra.mxu0 0
    %990 = vmatprep.subr.bf16.mxu0 0
    %991 = vmatpush1.bf16.msra.mxu0 0
    %992 = vmatprep.subr.bf16.mxu0 0
    %993 = vmatpush1.bf16.msra.mxu0 0
    %994 = vmatprep.mubr.bf16.mxu0 0
    %995 = vmatmul.mubr.bf16.gmra.mrb[0].mxu0 %v957
    %v996 = vpop.f32.mrb[0].mxu0
    %v997 = vadd.f32 0.0, %v996
    %v998 = vpop.f32.mrb[0].mxu0
    %v999 = vpop.f32.mrb[0].mxu0
    %v1000 = vpop.f32.mrb[0].mxu0
    %1001 = vdwg.mxu0
    %1002 = vrot.lane.b32.xlu0 %v334, 104
    %v1003 = vpop.permute.xlu0 %1002
    %1004 = vrot.lane.b32.xlu0 %v334, 72
    %v1005 = vpop.permute.xlu0 %1004
    %v1007 = vsel %vm339, %v1003, 0
    %v1010 = vsel %vm339, %v1005, 0
    %1012 = vmatprep.subr.bf16.mxu0 0
    %1013 = vmatpush1.bf16.xpose.msra.mxu0 %v1010
    %1014 = vmatprep.subr.bf16.mxu0 0
    %1015 = vmatpush1.bf16.xpose.msra.mxu0 0
    %1016 = vmatprep.subr.bf16.mxu0 0
    %1017 = vmatpush1.bf16.xpose.msra.mxu0 0
    %1018 = vmatprep.subr.bf16.mxu0 0
    %1019 = vmatpush1.bf16.xpose.msra.mxu0 0
    %1020 = vmatprep.subr.bf16.mxu0 0
    %1021 = vmatpush1.bf16.xpose.msra.mxu0 0
    %1022 = vmatprep.subr.bf16.mxu0 0
    %1023 = vmatpush1.bf16.xpose.msra.mxu0 0
    %1024 = vmatprep.subr.bf16.mxu0 0
    %1025 = vmatpush1.bf16.xpose.msra.mxu0 0
    %1026 = vmatprep.subr.bf16.mxu0 0
    %1027 = vmatpush1.bf16.xpose.msra.mxu0 0
    %1028 = vmatprep.subr.bf16.mxu0 0
    %1029 = vmatpush1.bf16.xpose.msra.mxu0 0
    %1030 = vmatprep.subr.bf16.mxu0 0
    %1031 = vmatpush1.bf16.xpose.msra.mxu0 0
    %1032 = vmatprep.subr.bf16.mxu0 0
    %1033 = vmatpush1.bf16.xpose.msra.mxu0 0
    %1034 = vmatprep.subr.bf16.mxu0 0
    %1035 = vmatpush1.bf16.xpose.msra.mxu0 0
    %1036 = vmatprep.subr.bf16.mxu0 0
    %1037 = vmatpush1.bf16.xpose.msra.mxu0 0
    %1038 = vmatprep.subr.bf16.mxu0 0
    %1039 = vmatpush1.bf16.xpose.msra.mxu0 0
    %1040 = vmatprep.subr.bf16.mxu0 0
    %1041 = vmatpush1.bf16.xpose.msra.mxu0 0
    %1042 = vmatprep.subr.bf16.mxu0 0
    %1043 = vmatpush1.bf16.xpose.msra.mxu0 0
    %1044 = vmatprep.mubr.bf16.mxu0 0
    %1045 = vmatmul.mubr.bf16.gmra.mrb[0].mxu0 %v1007
    %v1046 = vpop.f32.mrb[0].mxu0
    %v1047 = vadd.f32 0.0, %v1046
    %v1048 = vpop.f32.mrb[0].mxu0
    %v1049 = vpop.f32.mrb[0].mxu0
    %v1050 = vpop.f32.mrb[0].mxu0
    %1051 = vdwg.mxu0
    %1052 = vrot.lane.b32.xlu0 %v335, 104
    %v1053 = vpop.permute.xlu0 %1052
    %1054 = vrot.lane.b32.xlu0 %v335, 72
    %v1055 = vpop.permute.xlu0 %1054
    %v1057 = vsel %vm339, %v1053, 0
    %v1060 = vsel %vm339, %v1055, 0
    %1062 = vmatprep.subr.bf16.mxu0 0
    %1063 = vmatpush1.bf16.xpose.msra.mxu0 %v1060
    %1064 = vmatprep.subr.bf16.mxu0 0
    %1065 = vmatpush1.bf16.xpose.msra.mxu0 0
    %1066 = vmatprep.subr.bf16.mxu0 0
    %1067 = vmatpush1.bf16.xpose.msra.mxu0 0
    %1068 = vmatprep.subr.bf16.mxu0 0
    %1069 = vmatpush1.bf16.xpose.msra.mxu0 0
    %1070 = vmatprep.subr.bf16.mxu0 0
    %1071 = vmatpush1.bf16.xpose.msra.mxu0 0
    %1072 = vmatprep.subr.bf16.mxu0 0
    %1073 = vmatpush1.bf16.xpose.msra.mxu0 0
    %1074 = vmatprep.subr.bf16.mxu0 0
    %1075 = vmatpush1.bf16.xpose.msra.mxu0 0
    %1076 = vmatprep.subr.bf16.mxu0 0
    %1077 = vmatpush1.bf16.xpose.msra.mxu0 0
    %1078 = vmatprep.subr.bf16.mxu0 0
    %1079 = vmatpush1.bf16.xpose.msra.mxu0 0
    %1080 = vmatprep.subr.bf16.mxu0 0
    %1081 = vmatpush1.bf16.xpose.msra.mxu0 0
    %1082 = vmatprep.subr.bf16.mxu0 0
    %1083 = vmatpush1.bf16.xpose.msra.mxu0 0
    %1084 = vmatprep.subr.bf16.mxu0 0
    %1085 = vmatpush1.bf16.xpose.msra.mxu0 0
    %1086 = vmatprep.subr.bf16.mxu0 0
    %1087 = vmatpush1.bf16.xpose.msra.mxu0 0
    %1088 = vmatprep.subr.bf16.mxu0 0
    %1089 = vmatpush1.bf16.xpose.msra.mxu0 0
    %1090 = vmatprep.subr.bf16.mxu0 0
    %1091 = vmatpush1.bf16.xpose.msra.mxu0 0
    %1092 = vmatprep.subr.bf16.mxu0 0
    %1093 = vmatpush1.bf16.xpose.msra.mxu0 0
    %1094 = vmatprep.mubr.bf16.mxu0 0
    %1095 = vmatmul.mubr.bf16.gmra.mrb[0].mxu0 %v1057
    %v1096 = vpop.f32.mrb[0].mxu0
    %v1097 = vadd.f32 0.0, %v1096
    %v1098 = vpop.f32.mrb[0].mxu0
    %v1099 = vpop.f32.mrb[0].mxu0
    %v1100 = vpop.f32.mrb[0].mxu0
    %1101 = vdwg.mxu0
    %v1102 = vsel %vm339, %v1047, -inf
    %1103 = vmax.xlane.f32.xlu0 %v1102
    %v1104 = vpop.xlane.xlu0 %1103
    %v1105 = vsel %vm339, %v1097, -inf
    %1106 = vmax.xlane.f32.xlu0 %v1105
    %v1107 = vpop.xlane.xlu0 %1106
    %v1108 = vsub.f32 %v1047, %v1104
    %v1109 = vsub.f32 %v1097, %v1107
    %v1110 = vmul.f32 %v1108, 1.442695
    %v1111 = vpow.pop %v1110
    %v1112 = vmul.f32 %v1109, 1.442695
    %v1113 = vpow.pop %v1112
    %v1114 = vsel %vm339, %v1111, 0.0
    %1115 = vadd.xlane.f32.xlu0 %v1114
    %v1116 = vpop.xlane.xlu0 %1115
    %v1117 = vsel %vm339, %v1113, 0.0
    %1118 = vadd.xlane.f32.xlu0 %v1117
    %v1119 = vpop.xlane.xlu0 %1118
    %v1120 = vrcp.pop %v1116
    %v1121 = vrcp.pop %v1119
    %v1122 = vmul.f32 %v1111, %v1120
    %v1123 = vmul.f32 %v1113, %v1121
    %v1124 = vadd.f32 %v902, %v1122
    %v1125 = vadd.f32 %v903, %v1123
    %v1126 = vpack.c.bf16 %v1122, %v1122
    %v1127 = vpack.c.bf16 %v1123, %v1123
    %1128 = vrot.lane.b32.xlu0 %v334, 40
    %v1129 = vpop.permute.xlu0 %1128
    %v1131 = vsel %vm339, %v1126, 0
    %v1134 = vsel %vm466, %v1129, 0
    %1136 = vmatprep.subr.bf16.mxu0 0
    %1137 = vmatpush1.bf16.msra.mxu0 %v1134
    %1138 = vmatprep.subr.bf16.mxu0 0
    %1139 = vmatpush1.bf16.msra.mxu0 0
    %1140 = vmatprep.subr.bf16.mxu0 0
    %1141 = vmatpush1.bf16.msra.mxu0 0
    %1142 = vmatprep.subr.bf16.mxu0 0
    %1143 = vmatpush1.bf16.msra.mxu0 0
    %1144 = vmatprep.subr.bf16.mxu0 0
    %1145 = vmatpush1.bf16.msra.mxu0 0
    %1146 = vmatprep.subr.bf16.mxu0 0
    %1147 = vmatpush1.bf16.msra.mxu0 0
    %1148 = vmatprep.subr.bf16.mxu0 0
    %1149 = vmatpush1.bf16.msra.mxu0 0
    %1150 = vmatprep.subr.bf16.mxu0 0
    %1151 = vmatpush1.bf16.msra.mxu0 0
    %1152 = vmatprep.subr.bf16.mxu0 0
    %1153 = vmatpush1.bf16.msra.mxu0 0
    %1154 = vmatprep.subr.bf16.mxu0 0
    %1155 = vmatpush1.bf16.msra.mxu0 0
    %1156 = vmatprep.subr.bf16.mxu0 0
    %1157 = vmatpush1.bf16.msra.mxu0 0
    %1158 = vmatprep.subr.bf16.mxu0 0
    %1159 = vmatpush1.bf16.msra.mxu0 0
    %1160 = vmatprep.subr.bf16.mxu0 0
    %1161 = vmatpush1.bf16.msra.mxu0 0
    %1162 = vmatprep.subr.bf16.mxu0 0
    %1163 = vmatpush1.bf16.msra.mxu0 0
    %1164 = vmatprep.subr.bf16.mxu0 0
    %1165 = vmatpush1.bf16.msra.mxu0 0
    %1166 = vmatprep.subr.bf16.mxu0 0
    %1167 = vmatpush1.bf16.msra.mxu0 0
    %1168 = vmatprep.mubr.bf16.mxu0 0
    %1169 = vmatmul.mubr.bf16.gmra.mrb[0].mxu0 %v1131
    %v1170 = vpop.f32.mrb[0].mxu0
    %v1171 = vadd.f32 0.0, %v1170
    %v1172 = vpop.f32.mrb[0].mxu0
    %v1173 = vpop.f32.mrb[0].mxu0
    %v1174 = vpop.f32.mrb[0].mxu0
    %1175 = vdwg.mxu0
    %1176 = vrot.lane.b32.xlu0 %v335, 40
    %v1177 = vpop.permute.xlu0 %1176
    %v1179 = vsel %vm339, %v1127, 0
    %v1182 = vsel %vm466, %v1177, 0
    %1184 = vmatprep.subr.bf16.mxu0 0
    %1185 = vmatpush1.bf16.msra.mxu0 %v1182
    %1186 = vmatprep.subr.bf16.mxu0 0
    %1187 = vmatpush1.bf16.msra.mxu0 0
    %1188 = vmatprep.subr.bf16.mxu0 0
    %1189 = vmatpush1.bf16.msra.mxu0 0
    %1190 = vmatprep.subr.bf16.mxu0 0
    %1191 = vmatpush1.bf16.msra.mxu0 0
    %1192 = vmatprep.subr.bf16.mxu0 0
    %1193 = vmatpush1.bf16.msra.mxu0 0
    %1194 = vmatprep.subr.bf16.mxu0 0
    %1195 = vmatpush1.bf16.msra.mxu0 0
    %1196 = vmatprep.subr.bf16.mxu0 0
    %1197 = vmatpush1.bf16.msra.mxu0 0
    %1198 = vmatprep.subr.bf16.mxu0 0
    %1199 = vmatpush1.bf16.msra.mxu0 0
    %1200 = vmatprep.subr.bf16.mxu0 0
    %1201 = vmatpush1.bf16.msra.mxu0 0
    %1202 = vmatprep.subr.bf16.mxu0 0
    %1203 = vmatpush1.bf16.msra.mxu0 0
    %1204 = vmatprep.subr.bf16.mxu0 0
    %1205 = vmatpush1.bf16.msra.mxu0 0
    %1206 = vmatprep.subr.bf16.mxu0 0
    %1207 = vmatpush1.bf16.msra.mxu0 0
    %1208 = vmatprep.subr.bf16.mxu0 0
    %1209 = vmatpush1.bf16.msra.mxu0 0
    %1210 = vmatprep.subr.bf16.mxu0 0
    %1211 = vmatpush1.bf16.msra.mxu0 0
    %1212 = vmatprep.subr.bf16.mxu0 0
    %1213 = vmatpush1.bf16.msra.mxu0 0
    %1214 = vmatprep.subr.bf16.mxu0 0
    %1215 = vmatpush1.bf16.msra.mxu0 0
    %1216 = vmatprep.mubr.bf16.mxu0 0
    %1217 = vmatmul.mubr.bf16.gmra.mrb[0].mxu0 %v1179
    %v1218 = vpop.f32.mrb[0].mxu0
    %v1219 = vadd.f32 0.0, %v1218
    %v1220 = vpop.f32.mrb[0].mxu0
    %v1221 = vpop.f32.mrb[0].mxu0
    %v1222 = vpop.f32.mrb[0].mxu0
    %1223 = vdwg.mxu0
    %v1224 = vmul.f32 %v1124, 0.25
    %v1225 = vmul.f32 %v1125, 0.25
    %1226 = vst.msk [vmem:[#allocation5] sm:$0xff] %vm339, %v1224
    %1227 = vst.msk [vmem:[#allocation5 + $0x8] sm:$0xff] %vm339, %v1225
    %1230 = vrot.lane.b32.xlu0 %v727, 8
    %v1231 = vpop.permute.xlu0 %1230
    %1232 = vrot.lane.b32.xlu0 %v775, 8
    %v1233 = vpop.permute.xlu0 %1232
    %1238 = vrot.lane.b32.xlu0 %v949, 16
    %v1239 = vpop.permute.xlu0 %1238
    %1240 = vrot.lane.b32.xlu0 %v997, 16
    %v1241 = vpop.permute.xlu0 %1240
    %1246 = vrot.lane.b32.xlu0 %v1171, 24
    %v1247 = vpop.permute.xlu0 %1246
    %1248 = vrot.lane.b32.xlu0 %v1219, 24
    %v1249 = vpop.permute.xlu0 %1248
    %v1252 = vsel %vm339, %v505, %v1231
    %v1253 = vsel %vm339, %v553, %v1233
    %vm1254 = vcmask 130048
    %v1255 = vsel %vm1254, %v1252, %v1239
    %v1256 = vsel %vm1254, %v1253, %v1241
    %vm1257 = vcmask 195584
    %v1258 = vsel %vm1257, %v1255, %v1247
    %v1259 = vsel %vm1257, %v1256, %v1249
    %v1260 = vpack.c.bf16 %v1259, %v1258
    %v1261 = vld [vmem:[%s9] sm:$0xf]
    %v1262 = vld [vmem:[%s9 + $0x4] sm:$0xf]
    %v1263 = vld [vmem:[%s9 + $0x8] sm:$0xf]
    %v1264 = vld [vmem:[%s9 + $0xc] sm:$0xf]
    %v1265 = vld [vmem:[%s10] sm:$0x1]
    %v1267 = vlaneseq
    %v1268 = vshrl.u32 %v1267, 7
    %v1269 = vsub.s32 0, %v1268
    %v1270 = vrot.slane %v1265, %v1269
    %v1276 = vunpack.c.l.b16 %v1261
    %v1277 = vunpack.c.l.b16 %v1262
    %v1278 = vunpack.c.l.b16 %v1263
    %v1279 = vunpack.c.l.b16 %v1264
    %v1280 = vpack.c.b16 %v1277, %v1276
    %v1281 = vpack.c.b16 %v1279, %v1278
    %v1285 = vsel %vm91, %v1260, 0
    %1287 = vmatprep.subr.bf16.mxu0 0
    %1288 = vmatpush1.bf16.msra.mxu0 %v1280
    %1289 = vmatprep.subr.bf16.mxu0 0
    %1290 = vmatpush1.bf16.msra.mxu0 %v1281
    %1291 = vmatprep.subr.bf16.mxu0 0
    %1292 = vmatpush1.bf16.msra.mxu0 0
    %1293 = vmatprep.subr.bf16.mxu0 0
    %1294 = vmatpush1.bf16.msra.mxu0 0
    %1295 = vmatprep.subr.bf16.mxu0 0
    %1296 = vmatpush1.bf16.msra.mxu0 0
    %1297 = vmatprep.subr.bf16.mxu0 0
    %1298 = vmatpush1.bf16.msra.mxu0 0
    %1299 = vmatprep.subr.bf16.mxu0 0
    %1300 = vmatpush1.bf16.msra.mxu0 0
    %1301 = vmatprep.subr.bf16.mxu0 0
    %1302 = vmatpush1.bf16.msra.mxu0 0
    %1303 = vmatprep.subr.bf16.mxu0 0
    %1304 = vmatpush1.bf16.msra.mxu0 0
    %1305 = vmatprep.subr.bf16.mxu0 0
    %1306 = vmatpush1.bf16.msra.mxu0 0
    %1307 = vmatprep.subr.bf16.mxu0 0
    %1308 = vmatpush1.bf16.msra.mxu0 0
    %1309 = vmatprep.subr.bf16.mxu0 0
    %1310 = vmatpush1.bf16.msra.mxu0 0
    %1311 = vmatprep.subr.bf16.mxu0 0
    %1312 = vmatpush1.bf16.msra.mxu0 0
    %1313 = vmatprep.subr.bf16.mxu0 0
    %1314 = vmatpush1.bf16.msra.mxu0 0
    %1315 = vmatprep.subr.bf16.mxu0 0
    %1316 = vmatpush1.bf16.msra.mxu0 0
    %1317 = vmatprep.subr.bf16.mxu0 0
    %1318 = vmatpush1.bf16.msra.mxu0 0
    %1319 = vmatprep.mubr.bf16.mxu0 0
    %1320 = vmatmul.mubr.bf16.gmra.mrb[0].mxu0 %v1285
    %v1321 = vpop.f32.mrb[0].mxu0
    %v1322 = vadd.f32 %v1270, %v1321
    %v1323 = vpop.f32.mrb[0].mxu0
    %v1324 = vpop.f32.mrb[0].mxu0
    %v1325 = vadd.f32 %v1270, %v1324
    %v1326 = vpop.f32.mrb[0].mxu0
    %1327 = vdwg.mxu0
    %v1328 = vpack.c.bf16 %v265, %v262
    %v1329 = vld [vmem:[%s11] sm:$0xf]
    %v1330 = vld [vmem:[%s11 + $0x4] sm:$0xf]
    %v1331 = vld [vmem:[%s11 + $0x8] sm:$0xf]
    %v1332 = vld [vmem:[%s11 + $0xc] sm:$0xf]
    %v1333 = vpack.c.bf16 %v1325, %v1322
    %v1334 = vld [vmem:[%s11 + $0x10] sm:$0xf]
    %v1335 = vld [vmem:[%s11 + $0x14] sm:$0xf]
    %v1336 = vld [vmem:[%s11 + $0x18] sm:$0xf]
    %v1337 = vld [vmem:[%s11 + $0x1c] sm:$0xf]
    %v1342 = vunpack.c.l.b16 %v1334
    %v1343 = vunpack.c.l.b16 %v1335
    %v1344 = vunpack.c.l.b16 %v1336
    %v1345 = vunpack.c.l.b16 %v1337
    %v1346 = vpack.c.b16 %v1343, %v1342
    %v1347 = vpack.c.b16 %v1345, %v1344
    %v1351 = vsel %vm91, %v1333, 0
    %1353 = vmatprep.subr.bf16.mxu0 0
    %1354 = vmatpush1.bf16.msra.mxu0 %v1346
    %1355 = vmatprep.subr.bf16.mxu0 0
    %1356 = vmatpush1.bf16.msra.mxu0 %v1347
    %1357 = vmatprep.subr.bf16.mxu0 0
    %1358 = vmatpush1.bf16.msra.mxu0 0
    %1359 = vmatprep.subr.bf16.mxu0 0
    %1360 = vmatpush1.bf16.msra.mxu0 0
    %1361 = vmatprep.subr.bf16.mxu0 0
    %1362 = vmatpush1.bf16.msra.mxu0 0
    %1363 = vmatprep.subr.bf16.mxu0 0
    %1364 = vmatpush1.bf16.msra.mxu0 0
    %1365 = vmatprep.subr.bf16.mxu0 0
    %1366 = vmatpush1.bf16.msra.mxu0 0
    %1367 = vmatprep.subr.bf16.mxu0 0
    %1368 = vmatpush1.bf16.msra.mxu0 0
    %1369 = vmatprep.subr.bf16.mxu0 0
    %1370 = vmatpush1.bf16.msra.mxu0 0
    %1371 = vmatprep.subr.bf16.mxu0 0
    %1372 = vmatpush1.bf16.msra.mxu0 0
    %1373 = vmatprep.subr.bf16.mxu0 0
    %1374 = vmatpush1.bf16.msra.mxu0 0
    %1375 = vmatprep.subr.bf16.mxu0 0
    %1376 = vmatpush1.bf16.msra.mxu0 0
    %1377 = vmatprep.subr.bf16.mxu0 0
    %1378 = vmatpush1.bf16.msra.mxu0 0
    %1379 = vmatprep.subr.bf16.mxu0 0
    %1380 = vmatpush1.bf16.msra.mxu0 0
    %1381 = vmatprep.subr.bf16.mxu0 0
    %1382 = vmatpush1.bf16.msra.mxu0 0
    %1383 = vmatprep.subr.bf16.mxu0 0
    %1384 = vmatpush1.bf16.msra.mxu0 0
    %1385 = vmatprep.mubr.bf16.mxu0 0
    %1386 = vmatmul.mubr.bf16.gmra.mrb[0].mxu0 %v1351
    %v1387 = vpop.f32.mrb[0].mxu0
    %v1388 = vadd.f32 0.0, %v1387
    %v1389 = vpop.f32.mrb[0].mxu0
    %v1390 = vpop.f32.mrb[0].mxu0
    %v1391 = vadd.f32 0.0, %v1390
    %v1392 = vpop.f32.mrb[0].mxu0
    %1393 = vdwg.mxu0
    %v1398 = vunpack.c.l.b16 %v1329
    %v1399 = vunpack.c.l.b16 %v1330
    %v1400 = vunpack.c.l.b16 %v1331
    %v1401 = vunpack.c.l.b16 %v1332
    %v1402 = vpack.c.b16 %v1399, %v1398
    %v1403 = vpack.c.b16 %v1401, %v1400
    %v1407 = vsel %vm91, %v1328, 0
    %1409 = vmatprep.subr.bf16.mxu0 0
    %1410 = vmatpush1.bf16.msra.mxu0 %v1402
    %1411 = vmatprep.subr.bf16.mxu0 0
    %1412 = vmatpush1.bf16.msra.mxu0 %v1403
    %1413 = vmatprep.subr.bf16.mxu0 0
    %1414 = vmatpush1.bf16.msra.mxu0 0
    %1415 = vmatprep.subr.bf16.mxu0 0
    %1416 = vmatpush1.bf16.msra.mxu0 0
    %1417 = vmatprep.subr.bf16.mxu0 0
    %1418 = vmatpush1.bf16.msra.mxu0 0
    %1419 = vmatprep.subr.bf16.mxu0 0
    %1420 = vmatpush1.bf16.msra.mxu0 0
    %1421 = vmatprep.subr.bf16.mxu0 0
    %1422 = vmatpush1.bf16.msra.mxu0 0
    %1423 = vmatprep.subr.bf16.mxu0 0
    %1424 = vmatpush1.bf16.msra.mxu0 0
    %1425 = vmatprep.subr.bf16.mxu0 0
    %1426 = vmatpush1.bf16.msra.mxu0 0
    %1427 = vmatprep.subr.bf16.mxu0 0
    %1428 = vmatpush1.bf16.msra.mxu0 0
    %1429 = vmatprep.subr.bf16.mxu0 0
    %1430 = vmatpush1.bf16.msra.mxu0 0
    %1431 = vmatprep.subr.bf16.mxu0 0
    %1432 = vmatpush1.bf16.msra.mxu0 0
    %1433 = vmatprep.subr.bf16.mxu0 0
    %1434 = vmatpush1.bf16.msra.mxu0 0
    %1435 = vmatprep.subr.bf16.mxu0 0
    %1436 = vmatpush1.bf16.msra.mxu0 0
    %1437 = vmatprep.subr.bf16.mxu0 0
    %1438 = vmatpush1.bf16.msra.mxu0 0
    %1439 = vmatprep.subr.bf16.mxu0 0
    %1440 = vmatpush1.bf16.msra.mxu0 0
    %1441 = vmatprep.mubr.bf16.mxu0 0
    %1442 = vmatmul.mubr.bf16.gmra.mrb[0].mxu0 %v1407
    %v1443 = vpop.f32.mrb[0].mxu0
    %v1444 = vadd.f32 %v1388, %v1443
    %v1445 = vpop.f32.mrb[0].mxu0
    %v1446 = vpop.f32.mrb[0].mxu0
    %v1447 = vadd.f32 %v1391, %v1446
    %v1448 = vpop.f32.mrb[0].mxu0
    %1449 = vdwg.mxu0
    %v1450 = vld [vmem:[%s12] sm:$0x1]
    %v1452 = vlaneseq
    %v1453 = vshrl.u32 %v1452, 7
    %v1454 = vsub.s32 0, %v1453
    %v1455 = vrot.slane %v1450, %v1454
    %v1457 = vadd.f32 %v1444, %v1455
    %v1458 = vadd.f32 %v1447, %v1455
    %v1459 = vld [vmem:[%s13] sm:$0x1]
    %v1460 = vld [vmem:[%s14] sm:$0x1]
    %v1461 = vsel %vm91, %v1457, 0.0
    %1462 = vadd.xlane.f32.xlu0 %v1461
    %v1463 = vpop.xlane.xlu0 %1462
    %v1464 = vsel %vm91, %v1458, 0.0
    %1465 = vadd.xlane.f32.xlu0 %v1464
    %v1466 = vpop.xlane.xlu0 %1465
    %v1467 = vrcp.pop 32.0
    %v1468 = vmul.f32 %v1463, %v1467
    %v1469 = vmul.f32 %v1466, %v1467
    %v1470 = vsub.f32 %v1457, %v1468
    %v1471 = vsub.f32 %v1458, %v1469
    %v1472 = vmul.f32 %v1470, %v1470
    %v1473 = vmul.f32 %v1471, %v1471
    %v1474 = vsel %vm91, %v1472, 0.0
    %1475 = vadd.xlane.f32.xlu0 %v1474
    %v1476 = vpop.xlane.xlu0 %1475
    %v1477 = vsel %vm91, %v1473, 0.0
    %1478 = vadd.xlane.f32.xlu0 %v1477
    %v1479 = vpop.xlane.xlu0 %1478
    %v1480 = vmul.f32 %v1476, %v1467
    %v1481 = vmul.f32 %v1479, %v1467
    %v1482 = vadd.f32 %v1480, 1e-05
    %v1483 = vadd.f32 %v1481, 1e-05
    %v1484 = vrsqrt.pop %v1482
    %v1485 = vrsqrt.pop %v1483
    %v1486 = vmul.f32 %v1470, %v1484
    %v1487 = vmul.f32 %v1471, %v1485
    %v1489 = vlaneseq
    %v1490 = vshrl.u32 %v1489, 7
    %v1491 = vsub.s32 0, %v1490
    %v1492 = vrot.slane %v1459, %v1491
    %v1494 = vmul.f32 %v1486, %v1492
    %v1495 = vmul.f32 %v1487, %v1492
    %v1497 = vlaneseq
    %v1498 = vshrl.u32 %v1497, 7
    %v1499 = vsub.s32 0, %v1498
    %v1500 = vrot.slane %v1460, %v1499
    %v1502 = vadd.f32 %v1494, %v1500
    %v1503 = vadd.f32 %v1495, %v1500
    %v1504 = vmax.f32 %v1502, 0.0
    %v1505 = vmax.f32 %v1503, 0.0
    %1506 = vst.msk [vmem:[#allocation7] sm:$0xff] %vm91, %v1504
    %1507 = vst.msk [vmem:[#allocation7 + $0x8] sm:$0xff] %vm91, %v1505
    %v1508 = vld [vmem:[%s15] sm:$0x1]
    %v1510 = vlaneseq
    %v1511 = vshrl.u32 %v1510, 7
    %v1512 = vsub.s32 0, %v1511
    %v1513 = vrot.slane %v1508, %v1512
    %v1515 = vmul.f32 %v262, %v1513
    %v1516 = vmul.f32 %v265, %v1513
    %v1517 = vsel %vm91, %v1515, 0.0
    %1518 = vadd.xlane.f32.xlu0 %v1517
    %v1519 = vpop.xlane.xlu0 %1518
    %v1520 = vsel %vm91, %v1516, 0.0
    %1521 = vadd.xlane.f32.xlu0 %v1520
    %v1522 = vpop.xlane.xlu0 %1521
    %1523 = vrot.lane.b32.xlu0 %v1513, 96
    %v1524 = vpop.permute.xlu0 %1523
    %v1526 = vmul.f32 %v1322, %v1524
    %v1527 = vmul.f32 %v1325, %v1524
    %v1528 = vsel %vm91, %v1526, 0.0
    %1529 = vadd.xlane.f32.xlu0 %v1528
    %v1530 = vpop.xlane.xlu0 %1529
    %v1531 = vsel %vm91, %v1527, 0.0
    %1532 = vadd.xlane.f32.xlu0 %v1531
    %v1533 = vpop.xlane.xlu0 %1532
    %v1534 = vadd.f32 %v1519, %v1530
    %v1535 = vadd.f32 %v1522, %v1533
    %1536 = vrot.lane.b32.xlu0 %v1513, 64
    %v1537 = vpop.permute.xlu0 %1536
    %v1539 = vmul.f32 %v1504, %v1537
    %v1540 = vmul.f32 %v1505, %v1537
    %v1541 = vsel %vm91, %v1539, 0.0
    %1542 = vadd.xlane.f32.xlu0 %v1541
    %v1543 = vpop.xlane.xlu0 %1542
    %v1544 = vsel %vm91, %v1540, 0.0
    %1545 = vadd.xlane.f32.xlu0 %v1544
    %v1546 = vpop.xlane.xlu0 %1545
    %v1547 = vadd.f32 %v1534, %v1543
    %v1548 = vadd.f32 %v1535, %v1546
    %v1549 = vld [vmem:[#allocation2] sm:$0x1]
    %v1551 = vlaneseq
    %v1552 = vshrl.u32 %v1551, 7
    %v1553 = vsub.s32 0, %v1552
    %v1554 = vrot.slane %v1549, %v1553
    %v1556 = vadd.f32 %v1547, %v1554
    %v1557 = vadd.f32 %v1548, %v1554
    %v1558 = vxor.u32 %v1556, 2147483648
    %v1559 = vxor.u32 %v1557, 2147483648
    %v1560 = vmul.f32 %v1558, 1.442695
    %v1561 = vpow.pop %v1560
    %v1562 = vmul.f32 %v1559, 1.442695
    %v1563 = vpow.pop %v1562
    %v1564 = vadd.f32 %v1561, 1.0
    %v1565 = vadd.f32 %v1563, 1.0
    %v1566 = vrcp.pop %v1564
    %v1567 = vmul.f32 1.0, %v1566
    %v1568 = vrcp.pop %v1565
    %v1569 = vmul.f32 1.0, %v1568
    %vm1570 = vcmask 7168
    %1571 = vst.msk [vmem:[%s20] sm:$0xff] %vm1570, %v1567
    %1572 = vst.msk [vmem:[%s20 + $0x8] sm:$0xff] %vm1570, %v1569
    // Predicated region
    $region70: #{tpu_custom_call.1} parent=1 // pred_check
      _
    $region71: #{tpu_custom_call.1} parent=1 // pred_check_branch
      %1574 = sbr.rel (0) target = $region73
    $region72: #{tpu_custom_call.1} parent=1 // pred_region
      %s1576 = ssub.s32 256, 256
      %1577 = vsyncadd [#allocation4], %s1576
      %s1578 = sshll.u32 [#allocation3], 4
      %s1579 = int_to_ptr.vmem [resolvable:$true] %s1578
      %1584 = dma.vmem_to_hbm [thread:$0]  %s1579, 256, %s17, [#allocation4], 128, 128, 8
    $region73: #{tpu_custom_call.1} parent=1 // pred_fallthru
      _
    // Predicated region
    $region74: #{tpu_custom_call.1} parent=1 // pred_check
      _
    $region75: #{tpu_custom_call.1} parent=1 // pred_check_branch
      %1586 = sbr.rel (0) target = $region77
    $region76: #{tpu_custom_call.1} parent=1 // pred_region
      %s1588 = ssub.s32 256, 256
      %1589 = vsyncadd [#allocation6], %s1588
      %s1590 = sshll.u32 [#allocation5], 4
      %s1591 = int_to_ptr.vmem [resolvable:$true] %s1590
      %1596 = dma.vmem_to_hbm [thread:$0]  %s1591, 256, %s18, [#allocation6], 128, 128, 8
    $region77: #{tpu_custom_call.1} parent=1 // pred_fallthru
      _
    // Predicated region
    $region78: #{tpu_custom_call.1} parent=1 // pred_check
      _
    $region79: #{tpu_custom_call.1} parent=1 // pred_check_branch
      %1598 = sbr.rel (0) target = $region81
    $region80: #{tpu_custom_call.1} parent=1 // pred_region
      %s1600 = ssub.s32 256, 256
      %1601 = vsyncadd [#allocation6], %s1600
      %s1602 = sshll.u32 [#allocation7], 4
      %s1603 = int_to_ptr.vmem [resolvable:$true] %s1602
      %1608 = dma.vmem_to_hbm [thread:$0]  %s1603, 256, %s19, [#allocation6], 128, 128, 8
    $region81: #{tpu_custom_call.1} parent=1 // pred_fallthru
      _
    // Predicated region
    $region82: #{tpu_custom_call.1} parent=1 // pred_check
      _
    $region83: #{tpu_custom_call.1} parent=1 // pred_check_branch
      %1610 = sbr.rel (0) target = $region85
    $region84: #{tpu_custom_call.1} parent=1 // pred_region
      _
    $region85: #{tpu_custom_call.1} parent=1 // pred_fallthru
      _
    // Predicated region
    $region86: #{tpu_custom_call.1} parent=1 // pred_check
      _
    $region87: #{tpu_custom_call.1} parent=1 // pred_check_branch
      %1612 = sbr.rel (0) target = $region89
    $region88: #{tpu_custom_call.1} parent=1 // pred_region
      %1613 = dma.done [#allocation4], 256
    $region89: #{tpu_custom_call.1} parent=1 // pred_fallthru
      _
    // Predicated region
    $region90: #{tpu_custom_call.1} parent=1 // pred_check
      _
    $region91: #{tpu_custom_call.1} parent=1 // pred_check_branch
      %1615 = sbr.rel (0) target = $region93
    $region92: #{tpu_custom_call.1} parent=1 // pred_region
      %1616 = dma.done [#allocation6], 256
    $region93: #{tpu_custom_call.1} parent=1 // pred_fallthru
      _
    // Predicated region
    $region94: #{tpu_custom_call.1} parent=1 // pred_check
      _
    $region95: #{tpu_custom_call.1} parent=1 // pred_check_branch
      %1618 = sbr.rel (0) target = $region97
    $region96: #{tpu_custom_call.1} parent=1 // pred_region
      %1619 = dma.done [#allocation6], 256
    $region97: #{tpu_custom_call.1} parent=1 // pred_fallthru
      _
    // Predicated region
    $region98: #{tpu_custom_call.1} parent=1 // pred_check
      _
    $region99: #{tpu_custom_call.1} parent=1 // pred_check_branch
      %1621 = sbr.rel (0) target = $region101
    $region100: #{tpu_custom_call.1} parent=1 // pred_region
      _
    $region101: #{tpu_custom_call.1} parent=1 // pred_fallthru
      _
    %1622 = vsyncpa [#allocation4], 1
    %1623 = vsyncpa [#allocation6], 1

</llo_original>
